<compile_context>
chip_gen: v6e
topology: v6e:2x2x1
jax: 0.10.0
libtpu: 0.0.40
codegen_flags: <defaults>
</compile_context>

<pallas_src>
import math

import numpy as np

import jax
import jax.numpy as jnp
from jax.experimental import pallas as pl
from jax.experimental.pallas import tpu as pltpu


def _round_up(v, m):
    return (v + m - 1) // m * m


# ----------------------------------------------------------------------------
# Fused whole-block kernel: every Conv1d + leaky_relu + final projection conv in
# one pallas_call; activations stay in VMEM/vregs.
# ----------------------------------------------------------------------------
def _make_combd_kernel(layer_infos, proj_info, n_sel, slope):
    n = len(layer_infos)

    def kernel(*refs):
        x_ref, w_ref, b_ref = refs[0], refs[1], refs[2]
        sel_refs = refs[3:3 + n_sel]
        fmap_refs = refs[3 + n_sel:3 + n_sel + n]
        out_ref = refs[3 + n_sel + n]

        def conv(x, info, act):
            row0, c_out, w_cols, K, d, s, p, t_conv, t_out, sel_idx = info
            c_in = x.shape[0]
            # Block-diagonal (grouped) weight: one MXU matmul per layer.
            w = w_ref[row0:row0 + c_out, 0:w_cols]            # bf16 (c_out, K*c_in)
            b = b_ref[row0:row0 + c_out, :]                   # f32  (c_out, 1)
            if p > 0:                                         # halo pad in VMEM
                z = jnp.zeros((c_in, p), jnp.float32)
                x = jnp.concatenate([z, x, z], axis=1)
            # im2col: stack the K dilated tap slices along the contraction axis so
            # one deep matmul replaces K shallow per-tap matmuls.
            cols = jnp.concatenate(
                [x[:, k * d:k * d + t_conv] for k in range(K)],
                axis=0).astype(jnp.bfloat16)                  # (K*c_in, t_conv)
            y = jnp.dot(w, cols, preferred_element_type=jnp.float32)
            if s > 1:
                # Stride: host-precomputed exact 0/1 selection matrix, applied on
                # the MXU — no in-kernel iota/compare/cast, output is lane-dense.
                y = jnp.dot(y, sel_refs[sel_idx][...],
                            preferred_element_type=jnp.float32)
            y = y + b
            if act:
                y = jnp.maximum(y, y * slope)                 # leaky_relu(0.2)
            return y

        x = x_ref[0, :, :].astype(jnp.float32)
        for i, info in enumerate(layer_infos):
            x = conv(x, info, True)
            fmap_refs[i][0, :, :] = x.astype(fmap_refs[i].dtype)
        y = conv(x, proj_info, False)
        out_ref[0, :, :] = y.astype(out_ref.dtype)

    return kernel


# ----------------------------------------------------------------------------
# Parameters (PyTorch-default uniform init; weight_norm is identity at init)
# ----------------------------------------------------------------------------
def get_padding(kernel_size, dilation=1):
    return int((kernel_size * dilation - dilation) / 2)


def _conv_init(key, c_out, c_in_per_group, k):
    bound = 1.0 / math.sqrt(c_in_per_group * k)
    kw, kb = jax.random.split(key)
    w = jax.random.uniform(kw, (c_out, c_in_per_group, k), jnp.float32, -bound, bound)
    b = jax.random.uniform(kb, (c_out,), jnp.float32, -bound, bound)
    return w, b


def build_combd_block_params(key, h_u, d_k, d_s, d_d, d_g, d_p, op_f, op_k, op_g):
    filters = [[1, h_u[0]]]
    for i in range(len(h_u) - 1):
        filters.append([h_u[i], h_u[i + 1]])
    layers = []
    for (_ci, _co), _k, _s, _d, _g, _p in zip(filters, d_k, d_s, d_d, d_g, d_p):
        key, sub = jax.random.split(key)
        w, b = _conv_init(sub, _co, _ci // _g, _k)
        layers.append(dict(w=w, b=b, k=_k, s=_s, d=_d, g=_g, p=_p,
                           c_in=_ci, c_out=_co))
    key, sub = jax.random.split(key)
    pw, pb = _conv_init(sub, op_f, filters[-1][1] // op_g, op_k)
    proj = dict(w=pw, b=pb, k=op_k, s=1, d=1, g=op_g, p=0,
                c_in=filters[-1][1], c_out=op_f)
    return dict(layers=layers, proj=proj)


# ----------------------------------------------------------------------------
# Host-side preparation: block-diagonal flattening, operand packing, stride
# selection matrices, output-length chain.  All static / numpy, done once.
# ----------------------------------------------------------------------------
def _flatten_weight_blockdiag(w_np, c_in, groups):
    """(c_out, c_in//g, K) -> (c_out, K*c_in), block-diagonal over groups.

    Column ordering is tap-major / full-channel-minor, matching the in-kernel
    im2col (cols[k*c_in + c, t] = x_pad[c, t + k*d])."""
    c_out, in_g, K = w_np.shape
    out_g = c_out // groups
    w2 = np.zeros((c_out, K * c_in), np.float32)
    for gi in range(groups):
        rows = slice(gi * out_g, (gi + 1) * out_g)
        for k in range(K):
            cols = slice(k * c_in + gi * in_g, k * c_in + (gi + 1) * in_g)
            w2[rows, cols] = w_np[rows, :, k]
    return w2


def prepare_combd_block(params, t_in):
    convs = list(params["layers"]) + [params["proj"]]
    n = len(params["layers"])

    metas = []
    t = t_in
    for cp in convs:
        K, d, s, p = cp["k"], cp["d"], cp["s"], cp["p"]
        t_conv = t + 2 * p - d * (K - 1)
        t_out = (t_conv - 1) // s + 1
        metas.append(dict(K=K, d=d, s=s, p=p, c_in=cp["c_in"], c_out=cp["c_out"],
                          w_cols=K * cp["c_in"], t_conv=t_conv, t_out=t_out))
        t = t_out

    # Pack all weights/biases into two lane-dense buffers (rows padded to x8).
    pw_cols = _round_up(max(m["w_cols"] for m in metas), 128)
    row_offs, r = [], 0
    for m in metas:
        row_offs.append(r)
        r += _round_up(m["c_out"], 8)
    total_rows = _round_up(r, 8)
    packed_w = np.zeros((total_rows, pw_cols), np.float32)
    packed_b = np.zeros((total_rows, 1), np.float32)
    for cp, m, r0 in zip(convs, metas, row_offs):
        w2 = _flatten_weight_blockdiag(np.asarray(cp["w"], np.float32),
                                       m["c_in"], cp["g"])
        packed_w[r0:r0 + m["c_out"], :m["w_cols"]] = w2
        packed_b[r0:r0 + m["c_out"], 0] = np.asarray(cp["b"], np.float32)

    # Host-precomputed 0/1 stride-selection matrices (one per strided layer).
    sels, infos = [], []
    for m, r0 in zip(metas, row_offs):
        sel_idx = -1
        if m["s"] > 1:
            sel = np.zeros((m["t_conv"], m["t_out"]), np.float32)
            sel[np.arange(m["t_out"]) * m["s"], np.arange(m["t_out"])] = 1.0
            sel_idx = len(sels)
            sels.append(jnp.asarray(sel))
        infos.append((r0, m["c_out"], m["w_cols"], m["K"], m["d"], m["s"],
                      m["p"], m["t_conv"], m["t_out"], sel_idx))

    return dict(
        packed_w=jnp.asarray(packed_w).astype(jnp.bfloat16),  # MXU-native operands
        packed_b=jnp.asarray(packed_b, dtype=jnp.float32),    # bias stays f32
        sels=tuple(sels),
        layer_infos=tuple(infos[:n]),
        proj_info=infos[n],
        fmap_shapes=tuple((m["c_out"], m["t_out"]) for m in metas[:n]),
        out_shape=(metas[n]["c_out"], metas[n]["t_out"]),
        n=n,
    )


# ----------------------------------------------------------------------------
# Forward pass (one pallas_call for the whole block)
# ----------------------------------------------------------------------------
def combd_block_forward(prep, x, *, slope=0.2):
    """x: (B, C_in, T).  Returns (projection output, [feature map per conv layer])."""
    B, c0, t0 = x.shape
    n = prep["n"]
    n_sel = len(prep["sels"])
    kernel = _make_combd_kernel(prep["layer_infos"], prep["proj_info"], n_sel, slope)

    pw, pb = prep["packed_w"], prep["packed_b"]
    in_specs = [
        pl.BlockSpec((1, c0, t0), lambda b: (b, 0, 0)),
        pl.BlockSpec(pw.shape, lambda b: (0, 0)),
        pl.BlockSpec(pb.shape, lambda b: (0, 0)),
    ] + [pl.BlockSpec(s.shape, lambda b: (0, 0)) for s in prep["sels"]]

    fmap_shapes = prep["fmap_shapes"]
    oc, ot = prep["out_shape"]
    out_shapes = tuple(jax.ShapeDtypeStruct((B, c, t), x.dtype)
                       for c, t in fmap_shapes)
    out_shapes += (jax.ShapeDtypeStruct((B, oc, ot), x.dtype),)
    out_specs = tuple(pl.BlockSpec((1, c, t), lambda b: (b, 0, 0))
                      for c, t in fmap_shapes)
    out_specs += (pl.BlockSpec((1, oc, ot), lambda b: (b, 0, 0)),)

    outs = pl.pallas_call(
        kernel,
        out_shape=out_shapes,
        grid=(B,),
        in_specs=in_specs,
        out_specs=out_specs,
        compiler_params=pltpu.CompilerParams(dimension_semantics=("parallel",)),
    )(x, pw, pb, *prep["sels"])

    return outs[n], list(outs[:n])


# ----------------------------------------------------------------------------
if __name__ == "__main__":
    key = jax.random.PRNGKey(0)
    kp, kx = jax.random.split(key)

    # Small CoMBDBlock config (3 convs + projection) exercising stride, dilation,
    # groups and "same" padding like the avocodo CoMBD hyper-parameters.
    h_u = [8, 16, 32]
    d_k = [7, 11, 5]
    d_s = [1, 4, 1]
    d_d = [1, 1, 2]
    d_g = [1, 2, 2]
    d_p = [get_padding(7, 1), get_padding(11, 1), get_padding(5, 2)]
    op_f, op_k, op_g = 1, 3, 1

    params = build_combd_block_params(kp, h_u, d_k, d_s, d_d, d_g, d_p,
                                      op_f, op_k, op_g)

    B, T = 2, 512
    x = jax.random.normal(kx, (B, 1, T), jnp.float32)

    prep = prepare_combd_block(params, T)          # eager host-side packing
    fwd = jax.jit(lambda inp: combd_block_forward(prep, inp))
    y, fmap = fwd(x)
    jax.block_until_ready((y, fmap))
    print("KERNEL_OK")
</pallas_src>

<mosaic_0001>
module attributes {stable_mosaic.version = 11 : i64} {
  func.func @kernel(%arg0: i32, %arg1: memref<1x1x512xf32, #tpu.memory_space<vmem>>, %arg2: memref<64x128xbf16, #tpu.memory_space<vmem>>, %arg3: memref<64x1xf32, #tpu.memory_space<vmem>>, %arg4: memref<512x128xf32, #tpu.memory_space<vmem>>, %arg5: memref<1x8x512xf32, #tpu.memory_space<vmem>>, %arg6: memref<1x16x128xf32, #tpu.memory_space<vmem>>, %arg7: memref<1x32x128xf32, #tpu.memory_space<vmem>>, %arg8: memref<1x1x126xf32, #tpu.memory_space<vmem>>) attributes {dimension_semantics = [#tpu.dimension_semantics<parallel>], iteration_bounds = array<i64: 2>, scalar_prefetch = 0 : i64, scratch_operands = 0 : i64, tpu.core_type = #tpu.core_type<tc>, window_params = [{transform_indices = @transform_0, window_bounds = array<i64: 1, 1, 512>}, {pipeline_mode = #tpu.pipeline_mode<synchronous>, transform_indices = @transform_1, window_bounds = array<i64: 64, 128>}, {pipeline_mode = #tpu.pipeline_mode<synchronous>, transform_indices = @transform_2, window_bounds = array<i64: 64, 1>}, {pipeline_mode = #tpu.pipeline_mode<synchronous>, transform_indices = @transform_3, window_bounds = array<i64: 512, 128>}, {transform_indices = @transform_4, window_bounds = array<i64: 1, 8, 512>}, {transform_indices = @transform_5, window_bounds = array<i64: 1, 16, 128>}, {transform_indices = @transform_6, window_bounds = array<i64: 1, 32, 128>}, {transform_indices = @transform_7, window_bounds = array<i64: 1, 1, 126>}]} {
    %c0 = arith.constant 0 : index
    %c0_0 = arith.constant 0 : index
    %c0_1 = arith.constant 0 : index
    %0 = vector.load %arg1[%c0, %c0_0, %c0_1] : memref<1x1x512xf32, #tpu.memory_space<vmem>>, vector<1x1x512xf32>
    %1 = vector.shape_cast %0 : vector<1x1x512xf32> to vector<1x512xf32>
    %c0_2 = arith.constant 0 : index
    %c0_3 = arith.constant 0 : index
    %2 = vector.load %arg2[%c0_2, %c0_3] : memref<64x128xbf16, #tpu.memory_space<vmem>>, vector<8x7xbf16>
    %c0_4 = arith.constant 0 : index
    %c0_5 = arith.constant 0 : index
    %3 = vector.load %arg3[%c0_4, %c0_5] : memref<64x1xf32, #tpu.memory_space<vmem>>, vector<8x1xf32>
    %cst = arith.constant 0.000000e+00 : f32
    %4 = vector.broadcast %cst : f32 to vector<1x3xf32>
    %5 = tpu.concatenate %4, %1, %4 in 1 : vector<1x3xf32>, vector<1x512xf32>, vector<1x3xf32> -> vector<1x518xf32>
    %6 = vector.extract_strided_slice %5 {offsets = [0, 0], sizes = [1, 512], strides = [1, 1]} : vector<1x518xf32> to vector<1x512xf32>
    %7 = vector.extract_strided_slice %5 {offsets = [0, 1], sizes = [1, 512], strides = [1, 1]} : vector<1x518xf32> to vector<1x512xf32>
    %8 = vector.extract_strided_slice %5 {offsets = [0, 2], sizes = [1, 512], strides = [1, 1]} : vector<1x518xf32> to vector<1x512xf32>
    %9 = vector.extract_strided_slice %5 {offsets = [0, 3], sizes = [1, 512], strides = [1, 1]} : vector<1x518xf32> to vector<1x512xf32>
    %10 = vector.extract_strided_slice %5 {offsets = [0, 4], sizes = [1, 512], strides = [1, 1]} : vector<1x518xf32> to vector<1x512xf32>
    %11 = vector.extract_strided_slice %5 {offsets = [0, 5], sizes = [1, 512], strides = [1, 1]} : vector<1x518xf32> to vector<1x512xf32>
    %12 = vector.extract_strided_slice %5 {offsets = [0, 6], sizes = [1, 512], strides = [1, 1]} : vector<1x518xf32> to vector<1x512xf32>
    %13 = tpu.concatenate %6, %7, %8, %9, %10, %11, %12 in 0 : vector<1x512xf32>, vector<1x512xf32>, vector<1x512xf32>, vector<1x512xf32>, vector<1x512xf32>, vector<1x512xf32>, vector<1x512xf32> -> vector<7x512xf32>
    %14 = arith.truncf %13 : vector<7x512xf32> to vector<7x512xbf16>
    %cst_6 = arith.constant dense<0.000000e+00> : vector<8x512xf32>
    %15 = tpu.matmul %2, %14, %cst_6 {dimension_numbers = #tpu.dot_dimension_numbers<[1], [0], [0], [1], [0, 0, 1, 1], [], []>} : vector<8x7xbf16>, vector<7x512xbf16>, vector<8x512xf32> -> vector<8x512xf32>
    %16 = vector.broadcast %3 : vector<8x1xf32> to vector<8x512xf32>
    %17 = arith.addf %15, %16 : vector<8x512xf32>
    %cst_7 = arith.constant 2.000000e-01 : f32
    %18 = vector.broadcast %cst_7 : f32 to vector<8x512xf32>
    %19 = arith.mulf %17, %18 : vector<8x512xf32>
    %20 = arith.maximumf %17, %19 : vector<8x512xf32>
    %c0_8 = arith.constant 0 : index
    %c0_9 = arith.constant 0 : index
    %c0_10 = arith.constant 0 : index
    %21 = vector.load %arg5[%c0_8, %c0_9, %c0_10] : memref<1x8x512xf32, #tpu.memory_space<vmem>>, vector<1x8x512xf32>
    %22 = vector.shape_cast %21 : vector<1x8x512xf32> to vector<8x512xf32>
    %23 = vector.shape_cast %20 : vector<8x512xf32> to vector<1x8x512xf32>
    tpu.vector_store %arg5[%c0_8, %c0_9, %c0_10], %23 {strides = array<i32>} : memref<1x8x512xf32, #tpu.memory_space<vmem>>, vector<1x8x512xf32>,
    %c8 = arith.constant 8 : index
    %c0_11 = arith.constant 0 : index
    %24 = vector.load %arg2[%c8, %c0_11] : memref<64x128xbf16, #tpu.memory_space<vmem>>, vector<16x88xbf16>
    %c8_12 = arith.constant 8 : index
    %c0_13 = arith.constant 0 : index
    %25 = vector.load %arg3[%c8_12, %c0_13] : memref<64x1xf32, #tpu.memory_space<vmem>>, vector<16x1xf32>
    %cst_14 = arith.constant 0.000000e+00 : f32
    %26 = vector.broadcast %cst_14 : f32 to vector<8x5xf32>
    %27 = tpu.concatenate %26, %20, %26 in 1 : vector<8x5xf32>, vector<8x512xf32>, vector<8x5xf32> -> vector<8x522xf32>
    %28 = vector.extract_strided_slice %27 {offsets = [0, 0], sizes = [8, 512], strides = [1, 1]} : vector<8x522xf32> to vector<8x512xf32>
    %29 = vector.extract_strided_slice %27 {offsets = [0, 1], sizes = [8, 512], strides = [1, 1]} : vector<8x522xf32> to vector<8x512xf32>
    %30 = vector.extract_strided_slice %27 {offsets = [0, 2], sizes = [8, 512], strides = [1, 1]} : vector<8x522xf32> to vector<8x512xf32>
    %31 = vector.extract_strided_slice %27 {offsets = [0, 3], sizes = [8, 512], strides = [1, 1]} : vector<8x522xf32> to vector<8x512xf32>
    %32 = vector.extract_strided_slice %27 {offsets = [0, 4], sizes = [8, 512], strides = [1, 1]} : vector<8x522xf32> to vector<8x512xf32>
    %33 = vector.extract_strided_slice %27 {offsets = [0, 5], sizes = [8, 512], strides = [1, 1]} : vector<8x522xf32> to vector<8x512xf32>
    %34 = vector.extract_strided_slice %27 {offsets = [0, 6], sizes = [8, 512], strides = [1, 1]} : vector<8x522xf32> to vector<8x512xf32>
    %35 = vector.extract_strided_slice %27 {offsets = [0, 7], sizes = [8, 512], strides = [1, 1]} : vector<8x522xf32> to vector<8x512xf32>
    %36 = vector.extract_strided_slice %27 {offsets = [0, 8], sizes = [8, 512], strides = [1, 1]} : vector<8x522xf32> to vector<8x512xf32>
    %37 = vector.extract_strided_slice %27 {offsets = [0, 9], sizes = [8, 512], strides = [1, 1]} : vector<8x522xf32> to vector<8x512xf32>
    %38 = vector.extract_strided_slice %27 {offsets = [0, 10], sizes = [8, 512], strides = [1, 1]} : vector<8x522xf32> to vector<8x512xf32>
    %39 = tpu.concatenate %28, %29, %30, %31, %32, %33, %34, %35, %36, %37, %38 in 0 : vector<8x512xf32>, vector<8x512xf32>, vector<8x512xf32>, vector<8x512xf32>, vector<8x512xf32>, vector<8x512xf32>, vector<8x512xf32>, vector<8x512xf32>, vector<8x512xf32>, vector<8x512xf32>, vector<8x512xf32> -> vector<88x512xf32>
    %40 = arith.truncf %39 : vector<88x512xf32> to vector<88x512xbf16>
    %cst_15 = arith.constant dense<0.000000e+00> : vector<16x512xf32>
    %41 = tpu.matmul %24, %40, %cst_15 {dimension_numbers = #tpu.dot_dimension_numbers<[1], [0], [0], [1], [0, 0, 1, 1], [], []>} : vector<16x88xbf16>, vector<88x512xbf16>, vector<16x512xf32> -> vector<16x512xf32>
    %c0_16 = arith.constant 0 : index
    %c0_17 = arith.constant 0 : index
    %42 = vector.load %arg4[%c0_16, %c0_17] : memref<512x128xf32, #tpu.memory_space<vmem>>, vector<512x128xf32>
    %cst_18 = arith.constant dense<0.000000e+00> : vector<16x128xf32>
    %43 = tpu.matmul %41, %42, %cst_18 {dimension_numbers = #tpu.dot_dimension_numbers<[1], [0], [0], [1], [0, 0, 1, 1], [], []>} : vector<16x512xf32>, vector<512x128xf32>, vector<16x128xf32> -> vector<16x128xf32>
    %44 = vector.broadcast %25 : vector<16x1xf32> to vector<16x128xf32>
    %45 = arith.addf %43, %44 : vector<16x128xf32>
    %cst_19 = arith.constant 2.000000e-01 : f32
    %46 = vector.broadcast %cst_19 : f32 to vector<16x128xf32>
    %47 = arith.mulf %45, %46 : vector<16x128xf32>
    %48 = arith.maximumf %45, %47 : vector<16x128xf32>
    %c0_20 = arith.constant 0 : index
    %c0_21 = arith.constant 0 : index
    %c0_22 = arith.constant 0 : index
    %49 = vector.load %arg6[%c0_20, %c0_21, %c0_22] : memref<1x16x128xf32, #tpu.memory_space<vmem>>, vector<1x16x128xf32>
    %50 = vector.shape_cast %49 : vector<1x16x128xf32> to vector<16x128xf32>
    %51 = vector.shape_cast %48 : vector<16x128xf32> to vector<1x16x128xf32>
    tpu.vector_store %arg6[%c0_20, %c0_21, %c0_22], %51 {strides = array<i32>} : memref<1x16x128xf32, #tpu.memory_space<vmem>>, vector<1x16x128xf32>,
    %c24 = arith.constant 24 : index
    %c0_23 = arith.constant 0 : index
    %52 = vector.load %arg2[%c24, %c0_23] : memref<64x128xbf16, #tpu.memory_space<vmem>>, vector<32x80xbf16>
    %c24_24 = arith.constant 24 : index
    %c0_25 = arith.constant 0 : index
    %53 = vector.load %arg3[%c24_24, %c0_25] : memref<64x1xf32, #tpu.memory_space<vmem>>, vector<32x1xf32>
    %cst_26 = arith.constant 0.000000e+00 : f32
    %54 = vector.broadcast %cst_26 : f32 to vector<16x4xf32>
    %55 = tpu.concatenate %54, %48, %54 in 1 : vector<16x4xf32>, vector<16x128xf32>, vector<16x4xf32> -> vector<16x136xf32>
    %56 = vector.extract_strided_slice %55 {offsets = [0, 0], sizes = [16, 128], strides = [1, 1]} : vector<16x136xf32> to vector<16x128xf32>
    %57 = vector.extract_strided_slice %55 {offsets = [0, 2], sizes = [16, 128], strides = [1, 1]} : vector<16x136xf32> to vector<16x128xf32>
    %58 = vector.extract_strided_slice %55 {offsets = [0, 4], sizes = [16, 128], strides = [1, 1]} : vector<16x136xf32> to vector<16x128xf32>
    %59 = vector.extract_strided_slice %55 {offsets = [0, 6], sizes = [16, 128], strides = [1, 1]} : vector<16x136xf32> to vector<16x128xf32>
    %60 = vector.extract_strided_slice %55 {offsets = [0, 8], sizes = [16, 128], strides = [1, 1]} : vector<16x136xf32> to vector<16x128xf32>
    %61 = tpu.concatenate %56, %57, %58, %59, %60 in 0 : vector<16x128xf32>, vector<16x128xf32>, vector<16x128xf32>, vector<16x128xf32>, vector<16x128xf32> -> vector<80x128xf32>
    %62 = arith.truncf %61 : vector<80x128xf32> to vector<80x128xbf16>
    %cst_27 = arith.constant dense<0.000000e+00> : vector<32x128xf32>
    %63 = tpu.matmul %52, %62, %cst_27 {dimension_numbers = #tpu.dot_dimension_numbers<[1], [0], [0], [1], [0, 0, 1, 1], [], []>} : vector<32x80xbf16>, vector<80x128xbf16>, vector<32x128xf32> -> vector<32x128xf32>
    %64 = vector.broadcast %53 : vector<32x1xf32> to vector<32x128xf32>
    %65 = arith.addf %63, %64 : vector<32x128xf32>
    %cst_28 = arith.constant 2.000000e-01 : f32
    %66 = vector.broadcast %cst_28 : f32 to vector<32x128xf32>
    %67 = arith.mulf %65, %66 : vector<32x128xf32>
    %68 = arith.maximumf %65, %67 : vector<32x128xf32>
    %c0_29 = arith.constant 0 : index
    %c0_30 = arith.constant 0 : index
    %c0_31 = arith.constant 0 : index
    %69 = vector.load %arg7[%c0_29, %c0_30, %c0_31] : memref<1x32x128xf32, #tpu.memory_space<vmem>>, vector<1x32x128xf32>
    %70 = vector.shape_cast %69 : vector<1x32x128xf32> to vector<32x128xf32>
    %71 = vector.shape_cast %68 : vector<32x128xf32> to vector<1x32x128xf32>
    tpu.vector_store %arg7[%c0_29, %c0_30, %c0_31], %71 {strides = array<i32>} : memref<1x32x128xf32, #tpu.memory_space<vmem>>, vector<1x32x128xf32>,
    %c56 = arith.constant 56 : index
    %c0_32 = arith.constant 0 : index
    %72 = vector.load %arg2[%c56, %c0_32] : memref<64x128xbf16, #tpu.memory_space<vmem>>, vector<1x96xbf16>
    %c56_33 = arith.constant 56 : index
    %c0_34 = arith.constant 0 : index
    %73 = vector.load %arg3[%c56_33, %c0_34] : memref<64x1xf32, #tpu.memory_space<vmem>>, vector<1x1xf32>
    %74 = vector.extract_strided_slice %68 {offsets = [0, 0], sizes = [32, 126], strides = [1, 1]} : vector<32x128xf32> to vector<32x126xf32>
    %75 = vector.extract_strided_slice %68 {offsets = [0, 1], sizes = [32, 126], strides = [1, 1]} : vector<32x128xf32> to vector<32x126xf32>
    %76 = vector.extract_strided_slice %68 {offsets = [0, 2], sizes = [32, 126], strides = [1, 1]} : vector<32x128xf32> to vector<32x126xf32>
    %77 = tpu.concatenate %74, %75, %76 in 0 : vector<32x126xf32>, vector<32x126xf32>, vector<32x126xf32> -> vector<96x126xf32>
    %78 = arith.truncf %77 : vector<96x126xf32> to vector<96x126xbf16>
    %cst_35 = arith.constant dense<0.000000e+00> : vector<1x126xf32>
    %79 = tpu.matmul %72, %78, %cst_35 {dimension_numbers = #tpu.dot_dimension_numbers<[1], [0], [0], [1], [0, 0, 1, 1], [], []>} : vector<1x96xbf16>, vector<96x126xbf16>, vector<1x126xf32> -> vector<1x126xf32>
    %80 = vector.broadcast %73 : vector<1x1xf32> to vector<1x126xf32>
    %81 = arith.addf %79, %80 : vector<1x126xf32>
    %c0_36 = arith.constant 0 : index
    %c0_37 = arith.constant 0 : index
    %c0_38 = arith.constant 0 : index
    %82 = vector.load %arg8[%c0_36, %c0_37, %c0_38] : memref<1x1x126xf32, #tpu.memory_space<vmem>>, vector<1x1x126xf32>
    %83 = vector.shape_cast %82 : vector<1x1x126xf32> to vector<1x126xf32>
    %84 = vector.shape_cast %81 : vector<1x126xf32> to vector<1x1x126xf32>
    tpu.vector_store %arg8[%c0_36, %c0_37, %c0_38], %84 {strides = array<i32>} : memref<1x1x126xf32, #tpu.memory_space<vmem>>, vector<1x1x126xf32>,
    return
  }
  func.func @transform_0(%arg0: i32) -> (i32, i32, i32) {
    %c0_i32 = arith.constant 0 : i32
    %c0_i32_0 = arith.constant 0 : i32
    %c0_i32_1 = arith.constant 0 : i32
    return %arg0, %c0_i32, %c0_i32_0 : i32, i32, i32
  }
  func.func @transform_1(%arg0: i32) -> (i32, i32) {
    %c0_i32 = arith.constant 0 : i32
    %c0_i32_0 = arith.constant 0 : i32
    %c0_i32_1 = arith.constant 0 : i32
    return %c0_i32, %c0_i32_0 : i32, i32
  }
  func.func @transform_2(%arg0: i32) -> (i32, i32) {
    %c0_i32 = arith.constant 0 : i32
    %c0_i32_0 = arith.constant 0 : i32
    %c0_i32_1 = arith.constant 0 : i32
    return %c0_i32, %c0_i32_0 : i32, i32
  }
  func.func @transform_3(%arg0: i32) -> (i32, i32) {
    %c0_i32 = arith.constant 0 : i32
    %c0_i32_0 = arith.constant 0 : i32
    %c0_i32_1 = arith.constant 0 : i32
    return %c0_i32, %c0_i32_0 : i32, i32
  }
  func.func @transform_4(%arg0: i32) -> (i32, i32, i32) {
    %c0_i32 = arith.constant 0 : i32
    %c0_i32_0 = arith.constant 0 : i32
    %c0_i32_1 = arith.constant 0 : i32
    return %arg0, %c0_i32, %c0_i32_0 : i32, i32, i32
  }
  func.func @transform_5(%arg0: i32) -> (i32, i32, i32) {
    %c0_i32 = arith.constant 0 : i32
    %c0_i32_0 = arith.constant 0 : i32
    %c0_i32_1 = arith.constant 0 : i32
    return %arg0, %c0_i32, %c0_i32_0 : i32, i32, i32
  }
  func.func @transform_6(%arg0: i32) -> (i32, i32, i32) {
    %c0_i32 = arith.constant 0 : i32
    %c0_i32_0 = arith.constant 0 : i32
    %c0_i32_1 = arith.constant 0 : i32
    return %arg0, %c0_i32, %c0_i32_0 : i32, i32, i32
  }
  func.func @transform_7(%arg0: i32) -> (i32, i32, i32) {
    %c0_i32 = arith.constant 0 : i32
    %c0_i32_0 = arith.constant 0 : i32
    %c0_i32_1 = arith.constant 0 : i32
    return %arg0, %c0_i32, %c0_i32_0 : i32, i32, i32
  }
}

</mosaic_0001>

<llo_original>
// kernel: _lambda_.1
$region0: #{_lambda_.1}
  #allocation0 [shape = 'u32[]', space=smem, size = 0x4, offset = 0x4, fixed_abs, tag = 'smem constant byte address 0x4 - core index']
  #allocation1 [shape = 'u32[144,128]{1,0:T(1,128)}', space=vmem, size = 0x12000, scoped, tag = 'internal scratch']
  %s0 = inlined_call_operand.hbm [shape: f32[2,1,512], index: 0, kind: input, shape index: {}]
  %s1 = inlined_call_operand.hbm [shape: bf16[64,128], index: 1, kind: input, shape index: {}]
  %s2 = inlined_call_operand.hbm [shape: f32[64,1], index: 2, kind: input, shape index: {}]
  %s3 = inlined_call_operand.hbm [shape: f32[512,128], index: 3, kind: input, shape index: {}]
  %s4 = inlined_call_operand.hbm [shape: f32[2,8,512], index: 4, kind: output, shape index: {0}]
  %s5 = inlined_call_operand.hbm [shape: f32[2,16,128], index: 5, kind: output, shape index: {1}]
  %s6 = inlined_call_operand.hbm [shape: f32[2,32,128], index: 6, kind: output, shape index: {2}]
  %s7 = inlined_call_operand.hbm [shape: f32[2,1,126], index: 7, kind: output, shape index: {3}]
  %8 = xla_tuple %s4, %s5, %s6, %s7
  %s9 = sld [smem:[#allocation0]]
  $region89: #{_lambda_.1} parent=0
    _
  %s11 = ssub.s32 1, %s9
  %s12 = scalar_select 0, %s11, %s9
  $region1: #{_lambda_.1} parent=0
    #allocation2 [shape = 'u8[4096]{0}', space=vmem, size = 0x1000, scoped, tag = 'input window, operand 0']
    #allocation3 [shape = 's32[2]{0}', space=sflag, size = 0x8, scoped, tag = 'scoped memory for _lambda_.1']
    #allocation4 [shape = 's32[2]{0}', space=sflag, size = 0x8, scoped, tag = 'scoped memory for _lambda_.1']
    #allocation5 [shape = 'u8[16384]{0}', space=vmem, size = 0x4000, scoped, tag = 'input window, operand 1, single buffered']
    #allocation6 [shape = 's32[1]{0}', space=sflag, size = 0x4, scoped, tag = 'scoped memory for _lambda_.1']
    #allocation7 [shape = 'u8[32768]{0}', space=vmem, size = 0x8000, scoped, tag = 'input window, operand 2, single buffered']
    #allocation8 [shape = 'u8[262144]{0}', space=vmem, size = 0x40000, scoped, tag = 'input window, operand 3, single buffered']
    #allocation9 [shape = 's32[1]{0}', space=sflag, size = 0x4, scoped, tag = 'scoped memory for _lambda_.1']
    #allocation10 [shape = 'u8[32768]{0}', space=vmem, size = 0x8000, scoped, tag = 'output window, operand 0']
    #allocation11 [shape = 'u8[16384]{0}', space=vmem, size = 0x4000, scoped, tag = 'output window, operand 1']
    #allocation12 [shape = 's32[2]{0}', space=sflag, size = 0x8, scoped, tag = 'scoped memory for _lambda_.1']
    #allocation13 [shape = 'u8[32768]{0}', space=vmem, size = 0x8000, scoped, tag = 'output window, operand 2']
    #allocation14 [shape = 'u8[1024]{0}', space=vmem, size = 0x400, scoped, tag = 'output window, operand 3']
    #allocation15 [shape = 's32[2]{0}', space=sflag, size = 0x8, scoped, tag = 'scoped memory for _lambda_.1']
    %13 = vsyncpa [#allocation3], 0
    %s14 = scalar_lea.sflag [#allocation3], 1
    %15 = vsyncpa %s14, 0
    %16 = vsyncpa [#allocation6], 0
    %17 = vsyncpa [#allocation9], 0
    %18 = vsyncpa [#allocation4], 0
    %s19 = scalar_lea.sflag [#allocation4], 1
    %20 = vsyncpa %s19, 0
    %21 = vsyncpa [#allocation12], 0
    %s22 = scalar_lea.sflag [#allocation12], 1
    %23 = vsyncpa %s22, 0
    %24 = vsyncpa [#allocation15], 0
    %s25 = scalar_lea.sflag [#allocation15], 1
    %26 = vsyncpa %s25, 0
    loop: start=0, step=1, limit=4
    $region2: #{_lambda_.1} parent=1 // loop_pre_header
      _
    $region3: #{_lambda_.1} parent=1 // loop_header
      %s28 = sphi 0, %s32
      %p29 = scmp.ge.s32.totalorder %s28, 4
      %s38 = sphi 0, %s40
      %s41 = sphi 0, %s38
      %s42 = sphi 0, %s41
      %s58 = sphi 0, %s42
      %s62 = sphi 0, %s62
      %s64 = sphi 0, %s62
      %s65 = sphi 0, %s64
      %s79 = sphi 0, %s65
      %s83 = sphi 0, %s83
      %s85 = sphi 0, %s83
      %s86 = sphi 0, %s85
      %s100 = sphi 0, %s86
      %s104 = sphi 0, %s104
      %s106 = sphi 0, %s104
      %s107 = sphi 0, %s106
      %s121 = sphi 0, %s107
      %s127 = sphi 0, %s129
      %s130 = sphi 0, %s127
      %s131 = sphi 0, %s130
      %s147 = sphi 0, %s131
      %s153 = sphi 0, %s155
      %s156 = sphi 0, %s153
      %s157 = sphi 0, %s156
      %s173 = sphi 0, %s157
      %s179 = sphi 0, %s181
      %s182 = sphi 0, %s179
      %s183 = sphi 0, %s182
      %s199 = sphi 0, %s183
      %s205 = sphi 0, %s207
      %s208 = sphi 0, %s205
      %s209 = sphi 0, %s208
      %s225 = sphi 0, %s209
    $region4: #{_lambda_.1} parent=1 // loop_header_branch
      %31 = sbr.rel (%p29) target = $region8
    $region5: #{_lambda_.1} parent=1 // loop_body
      %s33 = ssub.s32 %s28, 1
      %s34 = ssub.s32 %s28, 2
      %s35 = sadd.s32 %s28, 1
      %s36 = ssub.s32 %s28, %s35
      %p37 = scmp.eq.s32.totalorder %s36, 0
      %s39 = sadd.s32 %s38, 1
      %s40 = scalar_select %p37, %s38, %s39
      %p43 = pneg %p37
      %p44 = scmp.eq.s32.totalorder %s28, 1
      %p45 = por %p43, %p44
      %p46 = scmp.ne.s32.totalorder %s38, %s41
      %p47 = scmp.eq.s32.totalorder %s28, 0
      %p48 = por %p46, %p47
      %p49 = scmp.ne.s32.totalorder %s38, %s41
      %p50 = scmp.eq.s32.totalorder %s33, 1
      %p51 = por %p49, %p50
      %p52 = scmp.ne.s32.totalorder %s41, %s42
      %p53 = scmp.eq.s32.totalorder %s33, 0
      %p54 = por %p52, %p53
      %p55 = scmp.ne.s32.totalorder %s41, %s42
      %p56 = scmp.eq.s32.totalorder %s34, 1
      %p57 = por %p55, %p56
      %p59 = scmp.ne.s32.totalorder %s42, %s58
      %p60 = scmp.eq.s32.totalorder %s34, 0
      %p61 = por %p59, %p60
      %s63 = sadd.s32 %s62, 1
      %p66 = scmp.eq.s32.totalorder %s28, 1
      %p67 = scmp.ne.s32.totalorder %s62, %s64
      %p68 = scmp.eq.s32.totalorder %s28, 0
      %p69 = por %p67, %p68
      %p70 = scmp.ne.s32.totalorder %s62, %s64
      %p71 = scmp.eq.s32.totalorder %s33, 1
      %p72 = por %p70, %p71
      %p73 = scmp.ne.s32.totalorder %s64, %s65
      %p74 = scmp.eq.s32.totalorder %s33, 0
      %p75 = por %p73, %p74
      %p76 = scmp.ne.s32.totalorder %s64, %s65
      %p77 = scmp.eq.s32.totalorder %s34, 1
      %p78 = por %p76, %p77
      %p80 = scmp.ne.s32.totalorder %s65, %s79
      %p81 = scmp.eq.s32.totalorder %s34, 0
      %p82 = por %p80, %p81
      %s84 = sadd.s32 %s83, 1
      %p87 = scmp.eq.s32.totalorder %s28, 1
      %p88 = scmp.ne.s32.totalorder %s83, %s85
      %p89 = scmp.eq.s32.totalorder %s28, 0
      %p90 = por %p88, %p89
      %p91 = scmp.ne.s32.totalorder %s83, %s85
      %p92 = scmp.eq.s32.totalorder %s33, 1
      %p93 = por %p91, %p92
      %p94 = scmp.ne.s32.totalorder %s85, %s86
      %p95 = scmp.eq.s32.totalorder %s33, 0
      %p96 = por %p94, %p95
      %p97 = scmp.ne.s32.totalorder %s85, %s86
      %p98 = scmp.eq.s32.totalorder %s34, 1
      %p99 = por %p97, %p98
      %p101 = scmp.ne.s32.totalorder %s86, %s100
      %p102 = scmp.eq.s32.totalorder %s34, 0
      %p103 = por %p101, %p102
      %s105 = sadd.s32 %s104, 1
      %p108 = scmp.eq.s32.totalorder %s28, 1
      %p109 = scmp.ne.s32.totalorder %s104, %s106
      %p110 = scmp.eq.s32.totalorder %s28, 0
      %p111 = por %p109, %p110
      %p112 = scmp.ne.s32.totalorder %s104, %s106
      %p113 = scmp.eq.s32.totalorder %s33, 1
      %p114 = por %p112, %p113
      %p115 = scmp.ne.s32.totalorder %s106, %s107
      %p116 = scmp.eq.s32.totalorder %s33, 0
      %p117 = por %p115, %p116
      %p118 = scmp.ne.s32.totalorder %s106, %s107
      %p119 = scmp.eq.s32.totalorder %s34, 1
      %p120 = por %p118, %p119
      %p122 = scmp.ne.s32.totalorder %s107, %s121
      %p123 = scmp.eq.s32.totalorder %s34, 0
      %p124 = por %p122, %p123
      %s125 = ssub.s32 %s28, %s35
      %p126 = scmp.eq.s32.totalorder %s125, 0
      %s128 = sadd.s32 %s127, 1
      %s129 = scalar_select %p126, %s127, %s128
      %p132 = pneg %p126
      %p133 = scmp.eq.s32.totalorder %s28, 1
      %p134 = por %p132, %p133
      %p135 = scmp.ne.s32.totalorder %s127, %s130
      %p136 = scmp.eq.s32.totalorder %s28, 0
      %p137 = por %p135, %p136
      %p138 = scmp.ne.s32.totalorder %s127, %s130
      %p139 = scmp.eq.s32.totalorder %s33, 1
      %p140 = por %p138, %p139
      %p141 = scmp.ne.s32.totalorder %s130, %s131
      %p142 = scmp.eq.s32.totalorder %s33, 0
      %p143 = por %p141, %p142
      %p144 = scmp.ne.s32.totalorder %s130, %s131
      %p145 = scmp.eq.s32.totalorder %s34, 1
      %p146 = por %p144, %p145
      %p148 = scmp.ne.s32.totalorder %s131, %s147
      %p149 = scmp.eq.s32.totalorder %s34, 0
      %p150 = por %p148, %p149
      %s151 = ssub.s32 %s28, %s35
      %p152 = scmp.eq.s32.totalorder %s151, 0
      %s154 = sadd.s32 %s153, 1
      %s155 = scalar_select %p152, %s153, %s154
      %p158 = pneg %p152
      %p159 = scmp.eq.s32.totalorder %s28, 1
      %p160 = por %p158, %p159
      %p161 = scmp.ne.s32.totalorder %s153, %s156
      %p162 = scmp.eq.s32.totalorder %s28, 0
      %p163 = por %p161, %p162
      %p164 = scmp.ne.s32.totalorder %s153, %s156
      %p165 = scmp.eq.s32.totalorder %s33, 1
      %p166 = por %p164, %p165
      %p167 = scmp.ne.s32.totalorder %s156, %s157
      %p168 = scmp.eq.s32.totalorder %s33, 0
      %p169 = por %p167, %p168
      %p170 = scmp.ne.s32.totalorder %s156, %s157
      %p171 = scmp.eq.s32.totalorder %s34, 1
      %p172 = por %p170, %p171
      %p174 = scmp.ne.s32.totalorder %s157, %s173
      %p175 = scmp.eq.s32.totalorder %s34, 0
      %p176 = por %p174, %p175
      %s177 = ssub.s32 %s28, %s35
      %p178 = scmp.eq.s32.totalorder %s177, 0
      %s180 = sadd.s32 %s179, 1
      %s181 = scalar_select %p178, %s179, %s180
      %p184 = pneg %p178
      %p185 = scmp.eq.s32.totalorder %s28, 1
      %p186 = por %p184, %p185
      %p187 = scmp.ne.s32.totalorder %s179, %s182
      %p188 = scmp.eq.s32.totalorder %s28, 0
      %p189 = por %p187, %p188
      %p190 = scmp.ne.s32.totalorder %s179, %s182
      %p191 = scmp.eq.s32.totalorder %s33, 1
      %p192 = por %p190, %p191
      %p193 = scmp.ne.s32.totalorder %s182, %s183
      %p194 = scmp.eq.s32.totalorder %s33, 0
      %p195 = por %p193, %p194
      %p196 = scmp.ne.s32.totalorder %s182, %s183
      %p197 = scmp.eq.s32.totalorder %s34, 1
      %p198 = por %p196, %p197
      %p200 = scmp.ne.s32.totalorder %s183, %s199
      %p201 = scmp.eq.s32.totalorder %s34, 0
      %p202 = por %p200, %p201
      %s203 = ssub.s32 %s28, %s35
      %p204 = scmp.eq.s32.totalorder %s203, 0
      %s206 = sadd.s32 %s205, 1
      %s207 = scalar_select %p204, %s205, %s206
      %p210 = pneg %p204
      %p211 = scmp.eq.s32.totalorder %s28, 1
      %p212 = por %p210, %p211
      %p213 = scmp.ne.s32.totalorder %s205, %s208
      %p214 = scmp.eq.s32.totalorder %s28, 0
      %p215 = por %p213, %p214
      %p216 = scmp.ne.s32.totalorder %s205, %s208
      %p217 = scmp.eq.s32.totalorder %s33, 1
      %p218 = por %p216, %p217
      %p219 = scmp.ne.s32.totalorder %s208, %s209
      %p220 = scmp.eq.s32.totalorder %s33, 0
      %p221 = por %p219, %p220
      %p222 = scmp.ne.s32.totalorder %s208, %s209
      %p223 = scmp.eq.s32.totalorder %s34, 1
      %p224 = por %p222, %p223
      %p226 = scmp.ne.s32.totalorder %s209, %s225
      %p227 = scmp.eq.s32.totalorder %s34, 0
      %p228 = por %p226, %p227
      %p229 = scmp.le.s32.totalorder 1, %s28
      %p230 = scmp.lt.s32.totalorder %s28, 3
      %p231 = pnand %p229, %p230
      %p232 = pneg %p231
      // Predicated region
      $region9: #{_lambda_.1} parent=5 // pred_check
        _
      $region10: #{_lambda_.1} parent=5 // pred_check_branch
        %234 = sbr.rel (%p231) target = $region12
      $region11: #{_lambda_.1} parent=5 // pred_region
        %s235 = ssub.s32 %s28, 1
        // Predicated region
        $region13: #{_lambda_.1} parent=11 // pred_check
          %p236 = pneg %p75
        $region14: #{_lambda_.1} parent=11 // pred_check_branch
          %238 = sbr.rel (%p236) target = $region16
        $region15: #{_lambda_.1} parent=11 // pred_region
          %s240 = ssub.s32 512, 512
          %241 = vsyncadd [#allocation6], %s240
          %s242 = sshll.u32 [#allocation5], 4
          %s243 = int_to_ptr.vmem [resolvable:$true] %s242
          %248 = dma.hbm_to_vmem [thread:$0]  %s1, 512, %s243, [#allocation6], 64, 64, 4
        $region16: #{_lambda_.1} parent=11 // pred_fallthru
          _
        // Predicated region
        $region17: #{_lambda_.1} parent=11 // pred_check
          %p249 = pneg %p96
        $region18: #{_lambda_.1} parent=11 // pred_check_branch
          %251 = sbr.rel (%p249) target = $region20
        $region19: #{_lambda_.1} parent=11 // pred_region
          %s253 = ssub.s32 1024, 1024
          %254 = vsyncadd [#allocation6], %s253
          %s255 = sshll.u32 [#allocation7], 4
          %s256 = int_to_ptr.vmem [resolvable:$true] %s255
          %261 = dma.hbm_to_vmem [thread:$0]  %s2, 1024, %s256, [#allocation6], 128, 128, 8
        $region20: #{_lambda_.1} parent=11 // pred_fallthru
          _
        // Predicated region
        $region21: #{_lambda_.1} parent=11 // pred_check
          %p262 = pneg %p117
        $region22: #{_lambda_.1} parent=11 // pred_check_branch
          %264 = sbr.rel (%p262) target = $region24
        $region23: #{_lambda_.1} parent=11 // pred_region
          %s266 = ssub.s32 8192, 8192
          %267 = vsyncadd [#allocation9], %s266
          %s268 = sshll.u32 [#allocation8], 4
          %s269 = int_to_ptr.vmem [resolvable:$true] %s268
          %274 = dma.hbm_to_vmem [thread:$0]  %s3, 8192, %s269, [#allocation9], 128, 128, 8
        $region24: #{_lambda_.1} parent=11 // pred_fallthru
          _
      $region12: #{_lambda_.1} parent=5 // pred_fallthru
        _
      %p275 = scmp.lt.s32.totalorder %s28, 2
      // Predicated region
      $region25: #{_lambda_.1} parent=5 // pred_check
        %p276 = pneg %p275
      $region26: #{_lambda_.1} parent=5 // pred_check_branch
        %278 = sbr.rel (%p276) target = $region28
      $region27: #{_lambda_.1} parent=5 // pred_region
        // Predicated region
        $region29: #{_lambda_.1} parent=27 // pred_check
          %p279 = pneg %p48
        $region30: #{_lambda_.1} parent=27 // pred_check_branch
          %281 = sbr.rel (%p279) target = $region32
        $region31: #{_lambda_.1} parent=27 // pred_region
          %s282 = sand.u32 %s38, 1
          %s283 = scalar_lea.sflag [#allocation3], %s282
          %s284 = sand.u32 %s38, 1
          %s285 = smul.addr %s284, 4
          %s286 = scalar_lea.vmem [#allocation2], %s285
          %s288 = ssub.s32 64, 64
          %289 = vsyncadd %s283, %s288
          %s290 = smul.addr %s28, 4
          %s291 = smul.addr %s290, 16
          %s292 = scalar_lea.hbm %s0, %s291
          %s294 = sshll.u32 %s286, 4
          %s295 = int_to_ptr.vmem [resolvable:$true] %s294
          %297 = dma.hbm_to_vmem [thread:$0]  %s292, 64, %s295, %s283
        $region32: #{_lambda_.1} parent=27 // pred_fallthru
          _
      $region28: #{_lambda_.1} parent=5 // pred_fallthru
        _
      %p298 = scmp.le.s32.totalorder 1, %s28
      %p299 = scmp.lt.s32.totalorder %s28, 3
      %p300 = pnand %p298, %p299
      %p301 = pneg %p300
      // Predicated region
      $region33: #{_lambda_.1} parent=5 // pred_check
        _
      $region34: #{_lambda_.1} parent=5 // pred_check_branch
        %303 = sbr.rel (%p300) target = $region36
      $region35: #{_lambda_.1} parent=5 // pred_region
        %s304 = ssub.s32 %s28, 1
        %s305 = sand.u32 %s41, 1
        %s306 = scalar_lea.sflag [#allocation3], %s305
        %s307 = sand.u32 %s41, 1
        %s308 = smul.addr %s307, 4
        %s309 = scalar_lea.vmem [#allocation2], %s308
        // Predicated region
        $region37: #{_lambda_.1} parent=35 // pred_check
          %p310 = pneg %p54
        $region38: #{_lambda_.1} parent=35 // pred_check_branch
          %312 = sbr.rel (%p310) target = $region40
        $region39: #{_lambda_.1} parent=35 // pred_region
          %313 = dma.done %s306, 64
        $region40: #{_lambda_.1} parent=35 // pred_fallthru
          _
        // Predicated region
        $region41: #{_lambda_.1} parent=35 // pred_check
          %p314 = pneg %p75
        $region42: #{_lambda_.1} parent=35 // pred_check_branch
          %316 = sbr.rel (%p314) target = $region44
        $region43: #{_lambda_.1} parent=35 // pred_region
          %317 = dma.done [#allocation6], 512
        $region44: #{_lambda_.1} parent=35 // pred_fallthru
          _
        // Predicated region
        $region45: #{_lambda_.1} parent=35 // pred_check
          %p318 = pneg %p96
        $region46: #{_lambda_.1} parent=35 // pred_check_branch
          %320 = sbr.rel (%p318) target = $region48
        $region47: #{_lambda_.1} parent=35 // pred_region
          %321 = dma.done [#allocation6], 1024
        $region48: #{_lambda_.1} parent=35 // pred_fallthru
          _
        // Predicated region
        $region49: #{_lambda_.1} parent=35 // pred_check
          %p322 = pneg %p117
        $region50: #{_lambda_.1} parent=35 // pred_check_branch
          %324 = sbr.rel (%p322) target = $region52
        $region51: #{_lambda_.1} parent=35 // pred_region
          %325 = dma.done [#allocation9], 8192
        $region52: #{_lambda_.1} parent=35 // pred_fallthru
          _
        %s326 = sand.u32 %s41, 1
        %s327 = scalar_lea.sflag [#allocation3], %s326
        %s328 = sand.u32 %s41, 1
        %s329 = smul.addr %s328, 4
        %s330 = scalar_lea.vmem [#allocation2], %s329
        %p331 = pneg %p54
        %p332 = pneg %p51
        %p333 = pneg %p75
        %p334 = pneg %p72
        %p335 = pneg %p96
        %p336 = pneg %p93
        %p337 = pneg %p117
        %p338 = pneg %p114
        %p339 = pneg %p143
        %p340 = pneg %p140
        %s341 = sand.u32 %s130, 1
        %s342 = scalar_lea.sflag [#allocation4], %s341
        %s343 = sand.u32 %s130, 1
        %s344 = smul.addr %s343, 32
        %s345 = scalar_lea.vmem [#allocation10], %s344
        %p346 = pneg %p169
        %p347 = pneg %p166
        %s348 = sand.u32 %s33, 1
        %s349 = scalar_lea.sflag [#allocation12], %s348
        %s350 = sand.u32 %s156, 1
        %s351 = smul.addr %s350, 16
        %s352 = scalar_lea.vmem [#allocation11], %s351
        %p353 = pneg %p195
        %p354 = pneg %p192
        %s355 = sand.u32 %s33, 1
        %s356 = scalar_lea.sflag [#allocation12], %s355
        %s357 = sand.u32 %s182, 1
        %s358 = smul.addr %s357, 32
        %s359 = scalar_lea.vmem [#allocation13], %s358
        %p360 = pneg %p221
        %p361 = pneg %p218
        %s362 = sand.u32 %s208, 1
        %s363 = scalar_lea.sflag [#allocation15], %s362
        %s364 = sand.u32 %s208, 1
        %s365 = scalar_lea.vmem [#allocation14], %s364
        %v367 = vld [vmem:[%s309] sm:$0xf]
        %v368 = vld [vmem:[#allocation5] sm:$0xf]
        %v369 = vld [vmem:[#allocation7] sm:$0xff]
        %v371 = vlaneseq
        %v372 = vshrl.u32 %v371, 7
        %v373 = vsub.s32 0, %v372
        %v374 = vrot.slane %v367, %v373
        %v375 = vlaneseq
        %v376 = vshrl.u32 %v375, 7
        %v377 = vsub.s32 1, %v376
        %v378 = vrot.slane %v367, %v377
        %v379 = vlaneseq
        %v380 = vshrl.u32 %v379, 7
        %v381 = vsub.s32 2, %v380
        %v382 = vrot.slane %v367, %v381
        %v383 = vlaneseq
        %v384 = vshrl.u32 %v383, 7
        %v385 = vsub.s32 3, %v384
        %v386 = vrot.slane %v367, %v385
        %387 = vrot.lane.b32.xlu0 %v374, 3
        %v388 = vpop.permute.xlu0 %387
        %389 = vrot.lane.b32.xlu0 %v378, 3
        %v390 = vpop.permute.xlu0 %389
        %391 = vrot.lane.b32.xlu0 %v382, 3
        %v392 = vpop.permute.xlu0 %391
        %393 = vrot.lane.b32.xlu0 %v386, 3
        %v394 = vpop.permute.xlu0 %393
        %vm395 = vcmask 23552
        %v396 = vsel %vm395, %v388, %v390
        %v397 = vsel %vm395, %v390, %v392
        %v398 = vsel %vm395, %v392, %v394
        %v404 = vsel %vm395, 0.0, %v388
        %v405 = vsel %vm395, %v394, 0.0
        %v408 = vrot.slane %v404, 7
        %v409 = vrot.slane %v396, 7
        %v410 = vrot.slane %v397, 7
        %v411 = vrot.slane %v398, 7
        %v412 = vrot.slane %v405, 7
        %413 = vrot.lane.b32.xlu0 %v408, 127
        %v414 = vpop.permute.xlu0 %413
        %415 = vrot.lane.b32.xlu0 %v409, 127
        %v416 = vpop.permute.xlu0 %415
        %417 = vrot.lane.b32.xlu0 %v410, 127
        %v418 = vpop.permute.xlu0 %417
        %419 = vrot.lane.b32.xlu0 %v411, 127
        %v420 = vpop.permute.xlu0 %419
        %421 = vrot.lane.b32.xlu0 %v412, 127
        %v422 = vpop.permute.xlu0 %421
        %vm423 = vcmask 1039360
        %v424 = vsel %vm423, %v414, %v416
        %v425 = vsel %vm423, %v416, %v418
        %v426 = vsel %vm423, %v418, %v420
        %v427 = vsel %vm423, %v420, %v422
        %v432 = vrot.slane %v404, 6
        %v433 = vrot.slane %v396, 6
        %v434 = vrot.slane %v397, 6
        %v435 = vrot.slane %v398, 6
        %v436 = vrot.slane %v405, 6
        %437 = vrot.lane.b32.xlu0 %v432, 126
        %v438 = vpop.permute.xlu0 %437
        %439 = vrot.lane.b32.xlu0 %v433, 126
        %v440 = vpop.permute.xlu0 %439
        %441 = vrot.lane.b32.xlu0 %v434, 126
        %v442 = vpop.permute.xlu0 %441
        %443 = vrot.lane.b32.xlu0 %v435, 126
        %v444 = vpop.permute.xlu0 %443
        %445 = vrot.lane.b32.xlu0 %v436, 126
        %v446 = vpop.permute.xlu0 %445
        %vm447 = vcmask 1031168
        %v448 = vsel %vm447, %v438, %v440
        %v449 = vsel %vm447, %v440, %v442
        %v450 = vsel %vm447, %v442, %v444
        %v451 = vsel %vm447, %v444, %v446
        %v456 = vrot.slane %v404, 5
        %v457 = vrot.slane %v396, 5
        %v458 = vrot.slane %v397, 5
        %v459 = vrot.slane %v398, 5
        %v460 = vrot.slane %v405, 5
        %461 = vrot.lane.b32.xlu0 %v456, 125
        %v462 = vpop.permute.xlu0 %461
        %463 = vrot.lane.b32.xlu0 %v457, 125
        %v464 = vpop.permute.xlu0 %463
        %465 = vrot.lane.b32.xlu0 %v458, 125
        %v466 = vpop.permute.xlu0 %465
        %467 = vrot.lane.b32.xlu0 %v459, 125
        %v468 = vpop.permute.xlu0 %467
        %469 = vrot.lane.b32.xlu0 %v460, 125
        %v470 = vpop.permute.xlu0 %469
        %vm471 = vcmask 1022976
        %v472 = vsel %vm471, %v462, %v464
        %v473 = vsel %vm471, %v464, %v466
        %v474 = vsel %vm471, %v466, %v468
        %v475 = vsel %vm471, %v468, %v470
        %v480 = vrot.slane %v404, 4
        %v481 = vrot.slane %v396, 4
        %v482 = vrot.slane %v397, 4
        %v483 = vrot.slane %v398, 4
        %v484 = vrot.slane %v405, 4
        %485 = vrot.lane.b32.xlu0 %v480, 124
        %v486 = vpop.permute.xlu0 %485
        %487 = vrot.lane.b32.xlu0 %v481, 124
        %v488 = vpop.permute.xlu0 %487
        %489 = vrot.lane.b32.xlu0 %v482, 124
        %v490 = vpop.permute.xlu0 %489
        %491 = vrot.lane.b32.xlu0 %v483, 124
        %v492 = vpop.permute.xlu0 %491
        %493 = vrot.lane.b32.xlu0 %v484, 124
        %v494 = vpop.permute.xlu0 %493
        %vm495 = vcmask 1014784
        %v496 = vsel %vm495, %v486, %v488
        %v497 = vsel %vm495, %v488, %v490
        %v498 = vsel %vm495, %v490, %v492
        %v499 = vsel %vm495, %v492, %v494
        %v504 = vrot.slane %v404, 3
        %v505 = vrot.slane %v396, 3
        %v506 = vrot.slane %v397, 3
        %v507 = vrot.slane %v398, 3
        %v508 = vrot.slane %v405, 3
        %509 = vrot.lane.b32.xlu0 %v504, 123
        %v510 = vpop.permute.xlu0 %509
        %511 = vrot.lane.b32.xlu0 %v505, 123
        %v512 = vpop.permute.xlu0 %511
        %513 = vrot.lane.b32.xlu0 %v506, 123
        %v514 = vpop.permute.xlu0 %513
        %515 = vrot.lane.b32.xlu0 %v507, 123
        %v516 = vpop.permute.xlu0 %515
        %517 = vrot.lane.b32.xlu0 %v508, 123
        %v518 = vpop.permute.xlu0 %517
        %vm519 = vcmask 1006592
        %v520 = vsel %vm519, %v510, %v512
        %v521 = vsel %vm519, %v512, %v514
        %v522 = vsel %vm519, %v514, %v516
        %v523 = vsel %vm519, %v516, %v518
        %v528 = vrot.slane %v404, 2
        %v529 = vrot.slane %v396, 2
        %v530 = vrot.slane %v397, 2
        %v531 = vrot.slane %v398, 2
        %v532 = vrot.slane %v405, 2
        %533 = vrot.lane.b32.xlu0 %v528, 122
        %v534 = vpop.permute.xlu0 %533
        %535 = vrot.lane.b32.xlu0 %v529, 122
        %v536 = vpop.permute.xlu0 %535
        %537 = vrot.lane.b32.xlu0 %v530, 122
        %v538 = vpop.permute.xlu0 %537
        %539 = vrot.lane.b32.xlu0 %v531, 122
        %v540 = vpop.permute.xlu0 %539
        %541 = vrot.lane.b32.xlu0 %v532, 122
        %v542 = vpop.permute.xlu0 %541
        %vm543 = vcmask 998400
        %v544 = vsel %vm543, %v534, %v536
        %v545 = vsel %vm543, %v536, %v538
        %v546 = vsel %vm543, %v538, %v540
        %v547 = vsel %vm543, %v540, %v542
        %vm552 = vcmask 1040384
        %v553 = vsel %vm552, %v404, %v424
        %v554 = vsel %vm552, %v396, %v425
        %v555 = vsel %vm552, %v397, %v426
        %v556 = vsel %vm552, %v398, %v427
        %vm557 = vcmask 1041408
        %v558 = vsel %vm557, %v553, %v448
        %v559 = vsel %vm557, %v554, %v449
        %v560 = vsel %vm557, %v555, %v450
        %v561 = vsel %vm557, %v556, %v451
        %vm562 = vcmask 1042432
        %v563 = vsel %vm562, %v558, %v472
        %v564 = vsel %vm562, %v559, %v473
        %v565 = vsel %vm562, %v560, %v474
        %v566 = vsel %vm562, %v561, %v475
        %vm567 = vcmask 1043456
        %v568 = vsel %vm567, %v563, %v496
        %v569 = vsel %vm567, %v564, %v497
        %v570 = vsel %vm567, %v565, %v498
        %v571 = vsel %vm567, %v566, %v499
        %vm572 = vcmask 1044480
        %v573 = vsel %vm572, %v568, %v520
        %v574 = vsel %vm572, %v569, %v521
        %v575 = vsel %vm572, %v570, %v522
        %v576 = vsel %vm572, %v571, %v523
        %vm577 = vcmask 1045504
        %v578 = vsel %vm577, %v573, %v544
        %v579 = vsel %vm577, %v574, %v545
        %v580 = vsel %vm577, %v575, %v546
        %v581 = vsel %vm577, %v576, %v547
        %v582 = vpack.c.bf16 %v578, %v578
        %v583 = vpack.c.bf16 %v579, %v579
        %v584 = vpack.c.bf16 %v580, %v580
        %v585 = vpack.c.bf16 %v581, %v581
        %587 = vset.pattern.permute.xlu0 0
        %588 = vperm.xlu0 %587, %v369
        %v589 = vpop.permute.xlu0 %588
        %vm591 = vcmask 56320
        %v593 = vsel %vm591, %v368, 0
        %v595 = vsel %vm562, 4294967295, 65535
        %v596 = vsel %vm567, %v595, 0
        %v598 = vand.u32 %v582, %v596
        %v601 = vand.u32 %v583, %v596
        %v604 = vand.u32 %v584, %v596
        %v607 = vand.u32 %v585, %v596
        %609 = vmatprep.subr.bf16.mxu0 0
        %610 = vmatpush1.bf16.msra.mxu0 0
        %611 = vmatprep.subr.bf16.mxu0 0
        %612 = vmatpush1.bf16.msra.mxu0 0
        %613 = vmatprep.subr.bf16.mxu0 0
        %614 = vmatpush1.bf16.msra.mxu0 0
        %615 = vmatprep.subr.bf16.mxu0 0
        %616 = vmatpush1.bf16.msra.mxu0 0
        %617 = vmatprep.subr.bf16.mxu0 0
        %618 = vmatpush1.bf16.msra.mxu0 0
        %619 = vmatprep.subr.bf16.mxu0 0
        %620 = vmatpush1.bf16.msra.mxu0 0
        %621 = vmatprep.subr.bf16.mxu0 0
        %622 = vmatpush1.bf16.msra.mxu0 0
        %623 = vmatprep.subr.bf16.mxu0 %v601
        %624 = vmatpush1.bf16.msra.mxu0 %v598
        %625 = vmatprep.subr.bf16.mxu0 0
        %626 = vmatpush2.bf16.msra.mxu0 0
        %627 = vmatprep.subr.bf16.mxu0 0
        %628 = vmatpush2.bf16.msra.mxu0 0
        %629 = vmatprep.subr.bf16.mxu0 0
        %630 = vmatpush2.bf16.msra.mxu0 0
        %631 = vmatprep.subr.bf16.mxu0 0
        %632 = vmatpush2.bf16.msra.mxu0 0
        %633 = vmatprep.subr.bf16.mxu0 0
        %634 = vmatpush2.bf16.msra.mxu0 0
        %635 = vmatprep.subr.bf16.mxu0 0
        %636 = vmatpush2.bf16.msra.mxu0 0
        %637 = vmatprep.subr.bf16.mxu0 0
        %638 = vmatpush2.bf16.msra.mxu0 0
        %639 = vmatprep.subr.bf16.mxu0 0
        %640 = vmatpush2.bf16.msra.mxu0 0
        %641 = vmatprep.mubr.bf16.mxu0 0
        %642 = vmatmul.mubr.bf16.gmra.mxu0 %v593
        %v643 = vpop.f32.mrf.mxu0
        %v644 = vadd.f32 %v589, %v643
        %v645 = vpop.f32.mrf.mxu0
        %v646 = vadd.f32 %v589, %v645
        %v647 = vpop.f32.mrf.mxu0
        %v648 = vpop.f32.mrf.mxu0
        %649 = vdwg.mxu0
        %650 = vmatprep.subr.bf16.mxu0 0
        %651 = vmatpush1.bf16.msra.mxu0 0
        %652 = vmatprep.subr.bf16.mxu0 0
        %653 = vmatpush1.bf16.msra.mxu0 0
        %654 = vmatprep.subr.bf16.mxu0 0
        %655 = vmatpush1.bf16.msra.mxu0 0
        %656 = vmatprep.subr.bf16.mxu0 0
        %657 = vmatpush1.bf16.msra.mxu0 0
        %658 = vmatprep.subr.bf16.mxu0 0
        %659 = vmatpush1.bf16.msra.mxu0 0
        %660 = vmatprep.subr.bf16.mxu0 0
        %661 = vmatpush1.bf16.msra.mxu0 0
        %662 = vmatprep.subr.bf16.mxu0 0
        %663 = vmatpush1.bf16.msra.mxu0 0
        %664 = vmatprep.subr.bf16.mxu0 %v607
        %665 = vmatpush1.bf16.msra.mxu0 %v604
        %666 = vmatprep.subr.bf16.mxu0 0
        %667 = vmatpush2.bf16.msra.mxu0 0
        %668 = vmatprep.subr.bf16.mxu0 0
        %669 = vmatpush2.bf16.msra.mxu0 0
        %670 = vmatprep.subr.bf16.mxu0 0
        %671 = vmatpush2.bf16.msra.mxu0 0
        %672 = vmatprep.subr.bf16.mxu0 0
        %673 = vmatpush2.bf16.msra.mxu0 0
        %674 = vmatprep.subr.bf16.mxu0 0
        %675 = vmatpush2.bf16.msra.mxu0 0
        %676 = vmatprep.subr.bf16.mxu0 0
        %677 = vmatpush2.bf16.msra.mxu0 0
        %678 = vmatprep.subr.bf16.mxu0 0
        %679 = vmatpush2.bf16.msra.mxu0 0
        %680 = vmatprep.subr.bf16.mxu0 0
        %681 = vmatpush2.bf16.msra.mxu0 0
        %682 = vmatprep.mubr.bf16.mxu0 0
        %683 = vmatmul.mubr.bf16.gmra.mxu0 %v593
        %v684 = vpop.f32.mrf.mxu0
        %v685 = vadd.f32 %v589, %v684
        %v686 = vpop.f32.mrf.mxu0
        %v687 = vadd.f32 %v589, %v686
        %v688 = vpop.f32.mrf.mxu0
        %v689 = vpop.f32.mrf.mxu0
        %690 = vdwg.mxu0
        %v691 = vmul.f32 %v644, 0.2
        %v692 = vmul.f32 %v646, 0.2
        %v693 = vmul.f32 %v685, 0.2
        %v694 = vmul.f32 %v687, 0.2
        %v695 = vmax.f32 %v644, %v691
        %v696 = vmax.f32 %v646, %v692
        %v697 = vmax.f32 %v685, %v693
        %v698 = vmax.f32 %v687, %v694
        %699 = vst [vmem:[%s345] sm:$0xff] %v695
        %700 = vst [vmem:[%s345 + $0x8] sm:$0xff] %v696
        %701 = vst [vmem:[%s345 + $0x10] sm:$0xff] %v697
        %702 = vst [vmem:[%s345 + $0x18] sm:$0xff] %v698
        %v703 = vld [vmem:[#allocation5 + $0x4] sm:$0xf]
        %v704 = vld [vmem:[#allocation5 + $0x8] sm:$0xf]
        %v705 = vld [vmem:[#allocation7 + $0x8] sm:$0xff]
        %v706 = vld [vmem:[#allocation7 + $0x10] sm:$0xff]
        %711 = vrot.lane.b32.xlu0 %v695, 5
        %v712 = vpop.permute.xlu0 %711
        %713 = vrot.lane.b32.xlu0 %v696, 5
        %v714 = vpop.permute.xlu0 %713
        %715 = vrot.lane.b32.xlu0 %v697, 5
        %v716 = vpop.permute.xlu0 %715
        %717 = vrot.lane.b32.xlu0 %v698, 5
        %v718 = vpop.permute.xlu0 %717
        %vm719 = vcmask 39936
        %v720 = vsel %vm719, %v712, %v714
        %v721 = vsel %vm719, %v714, %v716
        %v722 = vsel %vm719, %v716, %v718
        %v728 = vsel %vm719, 0.0, %v712
        %v729 = vsel %vm719, %v718, 0.0
        %732 = vrot.lane.b32.xlu0 %v728, 127
        %v733 = vpop.permute.xlu0 %732
        %734 = vrot.lane.b32.xlu0 %v720, 127
        %v735 = vpop.permute.xlu0 %734
        %736 = vrot.lane.b32.xlu0 %v721, 127
        %v737 = vpop.permute.xlu0 %736
        %738 = vrot.lane.b32.xlu0 %v722, 127
        %v739 = vpop.permute.xlu0 %738
        %740 = vrot.lane.b32.xlu0 %v729, 127
        %v741 = vpop.permute.xlu0 %740
        %v742 = vsel %vm423, %v733, %v735
        %v743 = vsel %vm423, %v735, %v737
        %v744 = vsel %vm423, %v737, %v739
        %v745 = vsel %vm423, %v739, %v741
        %750 = vrot.lane.b32.xlu0 %v728, 126
        %v751 = vpop.permute.xlu0 %750
        %752 = vrot.lane.b32.xlu0 %v720, 126
        %v753 = vpop.permute.xlu0 %752
        %754 = vrot.lane.b32.xlu0 %v721, 126
        %v755 = vpop.permute.xlu0 %754
        %756 = vrot.lane.b32.xlu0 %v722, 126
        %v757 = vpop.permute.xlu0 %756
        %758 = vrot.lane.b32.xlu0 %v729, 126
        %v759 = vpop.permute.xlu0 %758
        %v760 = vsel %vm447, %v751, %v753
        %v761 = vsel %vm447, %v753, %v755
        %v762 = vsel %vm447, %v755, %v757
        %v763 = vsel %vm447, %v757, %v759
        %768 = vrot.lane.b32.xlu0 %v728, 125
        %v769 = vpop.permute.xlu0 %768
        %770 = vrot.lane.b32.xlu0 %v720, 125
        %v771 = vpop.permute.xlu0 %770
        %772 = vrot.lane.b32.xlu0 %v721, 125
        %v773 = vpop.permute.xlu0 %772
        %774 = vrot.lane.b32.xlu0 %v722, 125
        %v775 = vpop.permute.xlu0 %774
        %776 = vrot.lane.b32.xlu0 %v729, 125
        %v777 = vpop.permute.xlu0 %776
        %v778 = vsel %vm471, %v769, %v771
        %v779 = vsel %vm471, %v771, %v773
        %v780 = vsel %vm471, %v773, %v775
        %v781 = vsel %vm471, %v775, %v777
        %786 = vrot.lane.b32.xlu0 %v728, 124
        %v787 = vpop.permute.xlu0 %786
        %788 = vrot.lane.b32.xlu0 %v720, 124
        %v789 = vpop.permute.xlu0 %788
        %790 = vrot.lane.b32.xlu0 %v721, 124
        %v791 = vpop.permute.xlu0 %790
        %792 = vrot.lane.b32.xlu0 %v722, 124
        %v793 = vpop.permute.xlu0 %792
        %794 = vrot.lane.b32.xlu0 %v729, 124
        %v795 = vpop.permute.xlu0 %794
        %v796 = vsel %vm495, %v787, %v789
        %v797 = vsel %vm495, %v789, %v791
        %v798 = vsel %vm495, %v791, %v793
        %v799 = vsel %vm495, %v793, %v795
        %804 = vrot.lane.b32.xlu0 %v728, 123
        %v805 = vpop.permute.xlu0 %804
        %806 = vrot.lane.b32.xlu0 %v720, 123
        %v807 = vpop.permute.xlu0 %806
        %808 = vrot.lane.b32.xlu0 %v721, 123
        %v809 = vpop.permute.xlu0 %808
        %810 = vrot.lane.b32.xlu0 %v722, 123
        %v811 = vpop.permute.xlu0 %810
        %812 = vrot.lane.b32.xlu0 %v729, 123
        %v813 = vpop.permute.xlu0 %812
        %v814 = vsel %vm519, %v805, %v807
        %v815 = vsel %vm519, %v807, %v809
        %v816 = vsel %vm519, %v809, %v811
        %v817 = vsel %vm519, %v811, %v813
        %822 = vrot.lane.b32.xlu0 %v728, 122
        %v823 = vpop.permute.xlu0 %822
        %824 = vrot.lane.b32.xlu0 %v720, 122
        %v825 = vpop.permute.xlu0 %824
        %826 = vrot.lane.b32.xlu0 %v721, 122
        %v827 = vpop.permute.xlu0 %826
        %828 = vrot.lane.b32.xlu0 %v722, 122
        %v829 = vpop.permute.xlu0 %828
        %830 = vrot.lane.b32.xlu0 %v729, 122
        %v831 = vpop.permute.xlu0 %830
        %v832 = vsel %vm543, %v823, %v825
        %v833 = vsel %vm543, %v825, %v827
        %v834 = vsel %vm543, %v827, %v829
        %v835 = vsel %vm543, %v829, %v831
        %840 = vrot.lane.b32.xlu0 %v728, 121
        %v841 = vpop.permute.xlu0 %840
        %842 = vrot.lane.b32.xlu0 %v720, 121
        %v843 = vpop.permute.xlu0 %842
        %844 = vrot.lane.b32.xlu0 %v721, 121
        %v845 = vpop.permute.xlu0 %844
        %846 = vrot.lane.b32.xlu0 %v722, 121
        %v847 = vpop.permute.xlu0 %846
        %848 = vrot.lane.b32.xlu0 %v729, 121
        %v849 = vpop.permute.xlu0 %848
        %vm850 = vcmask 990208
        %v851 = vsel %vm850, %v841, %v843
        %v852 = vsel %vm850, %v843, %v845
        %v853 = vsel %vm850, %v845, %v847
        %v854 = vsel %vm850, %v847, %v849
        %859 = vrot.lane.b32.xlu0 %v728, 120
        %v860 = vpop.permute.xlu0 %859
        %861 = vrot.lane.b32.xlu0 %v720, 120
        %v862 = vpop.permute.xlu0 %861
        %863 = vrot.lane.b32.xlu0 %v721, 120
        %v864 = vpop.permute.xlu0 %863
        %865 = vrot.lane.b32.xlu0 %v722, 120
        %v866 = vpop.permute.xlu0 %865
        %867 = vrot.lane.b32.xlu0 %v729, 120
        %v868 = vpop.permute.xlu0 %867
        %vm869 = vcmask 982016
        %v870 = vsel %vm869, %v860, %v862
        %v871 = vsel %vm869, %v862, %v864
        %v872 = vsel %vm869, %v864, %v866
        %v873 = vsel %vm869, %v866, %v868
        %878 = vrot.lane.b32.xlu0 %v728, 119
        %v879 = vpop.permute.xlu0 %878
        %880 = vrot.lane.b32.xlu0 %v720, 119
        %v881 = vpop.permute.xlu0 %880
        %882 = vrot.lane.b32.xlu0 %v721, 119
        %v883 = vpop.permute.xlu0 %882
        %884 = vrot.lane.b32.xlu0 %v722, 119
        %v885 = vpop.permute.xlu0 %884
        %886 = vrot.lane.b32.xlu0 %v729, 119
        %v887 = vpop.permute.xlu0 %886
        %vm888 = vcmask 973824
        %v889 = vsel %vm888, %v879, %v881
        %v890 = vsel %vm888, %v881, %v883
        %v891 = vsel %vm888, %v883, %v885
        %v892 = vsel %vm888, %v885, %v887
        %897 = vrot.lane.b32.xlu0 %v728, 118
        %v898 = vpop.permute.xlu0 %897
        %899 = vrot.lane.b32.xlu0 %v720, 118
        %v900 = vpop.permute.xlu0 %899
        %901 = vrot.lane.b32.xlu0 %v721, 118
        %v902 = vpop.permute.xlu0 %901
        %903 = vrot.lane.b32.xlu0 %v722, 118
        %v904 = vpop.permute.xlu0 %903
        %905 = vrot.lane.b32.xlu0 %v729, 118
        %v906 = vpop.permute.xlu0 %905
        %vm907 = vcmask 965632
        %v908 = vsel %vm907, %v898, %v900
        %v909 = vsel %vm907, %v900, %v902
        %v910 = vsel %vm907, %v902, %v904
        %v911 = vsel %vm907, %v904, %v906
        %v916 = vpack.c.bf16 %v742, %v728
        %v917 = vpack.c.bf16 %v743, %v720
        %v918 = vpack.c.bf16 %v744, %v721
        %v919 = vpack.c.bf16 %v745, %v722
        %v920 = vpack.c.bf16 %v778, %v760
        %v921 = vpack.c.bf16 %v779, %v761
        %v922 = vpack.c.bf16 %v780, %v762
        %v923 = vpack.c.bf16 %v781, %v763
        %v924 = vpack.c.bf16 %v814, %v796
        %v925 = vpack.c.bf16 %v815, %v797
        %v926 = vpack.c.bf16 %v816, %v798
        %v927 = vpack.c.bf16 %v817, %v799
        %v928 = vpack.c.bf16 %v851, %v832
        %v929 = vpack.c.bf16 %v852, %v833
        %v930 = vpack.c.bf16 %v853, %v834
        %v931 = vpack.c.bf16 %v854, %v835
        %v932 = vpack.c.bf16 %v889, %v870
        %v933 = vpack.c.bf16 %v890, %v871
        %v934 = vpack.c.bf16 %v891, %v872
        %v935 = vpack.c.bf16 %v892, %v873
        %v936 = vpack.c.bf16 %v908, %v908
        %v937 = vpack.c.bf16 %v909, %v909
        %v938 = vpack.c.bf16 %v910, %v910
        %v939 = vpack.c.bf16 %v911, %v911
        %v942 = vunpack.c.l.b16 %v703
        %v943 = vunpack.c.l.b16 %v704
        %v944 = vpack.c.b16 %v943, %v942
        %vm945 = vcmask 719872
        %v947 = vsel %vm945, %v944, 0
        %v950 = vsel %vm567, %v936, 0
        %v953 = vsel %vm567, %v937, 0
        %v956 = vsel %vm567, %v938, 0
        %v959 = vsel %vm567, %v939, 0
        %961 = vmatprep.subr.bf16.mxu0 0
        %962 = vmatpush1.bf16.msra.mxu0 0
        %963 = vmatprep.subr.bf16.mxu0 0
        %964 = vmatpush1.bf16.msra.mxu0 0
        %965 = vmatprep.subr.bf16.mxu0 %v953
        %966 = vmatpush1.bf16.msra.mxu0 %v950
        %967 = vmatprep.subr.bf16.mxu0 %v933
        %968 = vmatpush1.bf16.msra.mxu0 %v932
        %969 = vmatprep.subr.bf16.mxu0 %v929
        %970 = vmatpush1.bf16.msra.mxu0 %v928
        %971 = vmatprep.subr.bf16.mxu0 %v925
        %972 = vmatpush1.bf16.msra.mxu0 %v924
        %973 = vmatprep.subr.bf16.mxu0 %v921
        %974 = vmatpush1.bf16.msra.mxu0 %v920
        %975 = vmatprep.subr.bf16.mxu0 %v917
        %976 = vmatpush1.bf16.msra.mxu0 %v916
        %977 = vmatprep.subr.bf16.mxu0 0
        %978 = vmatpush2.bf16.msra.mxu0 0
        %979 = vmatprep.subr.bf16.mxu0 0
        %980 = vmatpush2.bf16.msra.mxu0 0
        %981 = vmatprep.subr.bf16.mxu0 0
        %982 = vmatpush2.bf16.msra.mxu0 0
        %983 = vmatprep.subr.bf16.mxu0 0
        %984 = vmatpush2.bf16.msra.mxu0 0
        %985 = vmatprep.subr.bf16.mxu0 0
        %986 = vmatpush2.bf16.msra.mxu0 0
        %987 = vmatprep.subr.bf16.mxu0 0
        %988 = vmatpush2.bf16.msra.mxu0 0
        %989 = vmatprep.subr.bf16.mxu0 0
        %990 = vmatpush2.bf16.msra.mxu0 0
        %991 = vmatprep.subr.bf16.mxu0 0
        %992 = vmatpush2.bf16.msra.mxu0 0
        %993 = vmatprep.mubr.bf16.mxu0 0
        %994 = vmatmul.mubr.bf16.gmra.mxu0 %v947
        %v995 = vpop.f32.mrf.mxu0
        %v996 = vadd.f32 0.0, %v995
        %v997 = vpop.f32.mrf.mxu0
        %v998 = vadd.f32 0.0, %v997
        %v999 = vpop.f32.mrf.mxu0
        %v1000 = vadd.f32 0.0, %v999
        %v1001 = vpop.f32.mrf.mxu0
        %v1002 = vadd.f32 0.0, %v1001
        %1003 = vdwg.mxu0
        %1004 = vmatprep.subr.bf16.mxu0 0
        %1005 = vmatpush1.bf16.msra.mxu0 0
        %1006 = vmatprep.subr.bf16.mxu0 0
        %1007 = vmatpush1.bf16.msra.mxu0 0
        %1008 = vmatprep.subr.bf16.mxu0 %v959
        %1009 = vmatpush1.bf16.msra.mxu0 %v956
        %1010 = vmatprep.subr.bf16.mxu0 %v935
        %1011 = vmatpush1.bf16.msra.mxu0 %v934
        %1012 = vmatprep.subr.bf16.mxu0 %v931
        %1013 = vmatpush1.bf16.msra.mxu0 %v930
        %1014 = vmatprep.subr.bf16.mxu0 %v927
        %1015 = vmatpush1.bf16.msra.mxu0 %v926
        %1016 = vmatprep.subr.bf16.mxu0 %v923
        %1017 = vmatpush1.bf16.msra.mxu0 %v922
        %1018 = vmatprep.subr.bf16.mxu0 %v919
        %1019 = vmatpush1.bf16.msra.mxu0 %v918
        %1020 = vmatprep.subr.bf16.mxu0 0
        %1021 = vmatpush2.bf16.msra.mxu0 0
        %1022 = vmatprep.subr.bf16.mxu0 0
        %1023 = vmatpush2.bf16.msra.mxu0 0
        %1024 = vmatprep.subr.bf16.mxu0 0
        %1025 = vmatpush2.bf16.msra.mxu0 0
        %1026 = vmatprep.subr.bf16.mxu0 0
        %1027 = vmatpush2.bf16.msra.mxu0 0
        %1028 = vmatprep.subr.bf16.mxu0 0
        %1029 = vmatpush2.bf16.msra.mxu0 0
        %1030 = vmatprep.subr.bf16.mxu0 0
        %1031 = vmatpush2.bf16.msra.mxu0 0
        %1032 = vmatprep.subr.bf16.mxu0 0
        %1033 = vmatpush2.bf16.msra.mxu0 0
        %1034 = vmatprep.subr.bf16.mxu0 0
        %1035 = vmatpush2.bf16.msra.mxu0 0
        %1036 = vmatprep.mubr.bf16.mxu0 0
        %1037 = vmatmul.mubr.bf16.gmra.mxu0 %v947
        %v1038 = vpop.f32.mrf.mxu0
        %v1039 = vadd.f32 0.0, %v1038
        %v1040 = vpop.f32.mrf.mxu0
        %v1041 = vadd.f32 0.0, %v1040
        %v1042 = vpop.f32.mrf.mxu0
        %v1043 = vadd.f32 0.0, %v1042
        %v1044 = vpop.f32.mrf.mxu0
        %v1045 = vadd.f32 0.0, %v1044
        %1046 = vdwg.mxu0
        %v1047 = vld [vmem:[#allocation8] sm:$0xff]
        %v1048 = vld [vmem:[#allocation8 + $0x8] sm:$0xff]
        %v1049 = vld [vmem:[#allocation8 + $0x10] sm:$0xff]
        %v1050 = vld [vmem:[#allocation8 + $0x18] sm:$0xff]
        %v1051 = vld [vmem:[#allocation8 + $0x20] sm:$0xff]
        %v1052 = vld [vmem:[#allocation8 + $0x28] sm:$0xff]
        %v1053 = vld [vmem:[#allocation8 + $0x30] sm:$0xff]
        %v1054 = vld [vmem:[#allocation8 + $0x38] sm:$0xff]
        %v1055 = vld [vmem:[#allocation8 + $0x40] sm:$0xff]
        %v1056 = vld [vmem:[#allocation8 + $0x48] sm:$0xff]
        %v1057 = vld [vmem:[#allocation8 + $0x50] sm:$0xff]
        %v1058 = vld [vmem:[#allocation8 + $0x58] sm:$0xff]
        %v1059 = vld [vmem:[#allocation8 + $0x60] sm:$0xff]
        %v1060 = vld [vmem:[#allocation8 + $0x68] sm:$0xff]
        %v1061 = vld [vmem:[#allocation8 + $0x70] sm:$0xff]
        %v1062 = vld [vmem:[#allocation8 + $0x78] sm:$0xff]
        %v1063 = vld [vmem:[#allocation8 + $0x80] sm:$0xff]
        %v1064 = vld [vmem:[#allocation8 + $0x88] sm:$0xff]
        %v1065 = vld [vmem:[#allocation8 + $0x90] sm:$0xff]
        %v1066 = vld [vmem:[#allocation8 + $0x98] sm:$0xff]
        %v1067 = vld [vmem:[#allocation8 + $0xa0] sm:$0xff]
        %v1068 = vld [vmem:[#allocation8 + $0xa8] sm:$0xff]
        %v1069 = vld [vmem:[#allocation8 + $0xb0] sm:$0xff]
        %v1070 = vld [vmem:[#allocation8 + $0xb8] sm:$0xff]
        %v1071 = vld [vmem:[#allocation8 + $0xc0] sm:$0xff]
        %v1072 = vld [vmem:[#allocation8 + $0xc8] sm:$0xff]
        %v1073 = vld [vmem:[#allocation8 + $0xd0] sm:$0xff]
        %v1074 = vld [vmem:[#allocation8 + $0xd8] sm:$0xff]
        %v1075 = vld [vmem:[#allocation8 + $0xe0] sm:$0xff]
        %v1076 = vld [vmem:[#allocation8 + $0xe8] sm:$0xff]
        %v1077 = vld [vmem:[#allocation8 + $0xf0] sm:$0xff]
        %v1078 = vld [vmem:[#allocation8 + $0xf8] sm:$0xff]
        %v1079 = vld [vmem:[#allocation8 + $0x100] sm:$0xff]
        %v1080 = vld [vmem:[#allocation8 + $0x108] sm:$0xff]
        %v1081 = vld [vmem:[#allocation8 + $0x110] sm:$0xff]
        %v1082 = vld [vmem:[#allocation8 + $0x118] sm:$0xff]
        %v1083 = vld [vmem:[#allocation8 + $0x120] sm:$0xff]
        %v1084 = vld [vmem:[#allocation8 + $0x128] sm:$0xff]
        %v1085 = vld [vmem:[#allocation8 + $0x130] sm:$0xff]
        %v1086 = vld [vmem:[#allocation8 + $0x138] sm:$0xff]
        %v1087 = vld [vmem:[#allocation8 + $0x140] sm:$0xff]
        %v1088 = vld [vmem:[#allocation8 + $0x148] sm:$0xff]
        %v1089 = vld [vmem:[#allocation8 + $0x150] sm:$0xff]
        %v1090 = vld [vmem:[#allocation8 + $0x158] sm:$0xff]
        %v1091 = vld [vmem:[#allocation8 + $0x160] sm:$0xff]
        %v1092 = vld [vmem:[#allocation8 + $0x168] sm:$0xff]
        %v1093 = vld [vmem:[#allocation8 + $0x170] sm:$0xff]
        %v1094 = vld [vmem:[#allocation8 + $0x178] sm:$0xff]
        %v1095 = vld [vmem:[#allocation8 + $0x180] sm:$0xff]
        %v1096 = vld [vmem:[#allocation8 + $0x188] sm:$0xff]
        %v1097 = vld [vmem:[#allocation8 + $0x190] sm:$0xff]
        %v1098 = vld [vmem:[#allocation8 + $0x198] sm:$0xff]
        %v1099 = vld [vmem:[#allocation8 + $0x1a0] sm:$0xff]
        %v1100 = vld [vmem:[#allocation8 + $0x1a8] sm:$0xff]
        %v1101 = vld [vmem:[#allocation8 + $0x1b0] sm:$0xff]
        %v1102 = vld [vmem:[#allocation8 + $0x1b8] sm:$0xff]
        %v1103 = vld [vmem:[#allocation8 + $0x1c0] sm:$0xff]
        %v1104 = vld [vmem:[#allocation8 + $0x1c8] sm:$0xff]
        %v1105 = vld [vmem:[#allocation8 + $0x1d0] sm:$0xff]
        %v1106 = vld [vmem:[#allocation8 + $0x1d8] sm:$0xff]
        %v1107 = vld [vmem:[#allocation8 + $0x1e0] sm:$0xff]
        %v1108 = vld [vmem:[#allocation8 + $0x1e8] sm:$0xff]
        %v1109 = vld [vmem:[#allocation8 + $0x1f0] sm:$0xff]
        %v1110 = vld [vmem:[#allocation8 + $0x1f8] sm:$0xff]
        %1112 = vset.pattern.permute.xlu0 0
        %1113 = vperm.xlu0 %1112, %v705
        %v1114 = vpop.permute.xlu0 %1113
        %1117 = vset.pattern.permute.xlu0 0
        %1118 = vperm.xlu0 %1117, %v706
        %v1119 = vpop.permute.xlu0 %1118
        %1121 = vmatprep.subr.mxu0 0.0
        %1122 = vmatpush1.msra.mxu0 %v1062
        %1123 = vmatprep.subr.mxu0 0.0
        %1124 = vmatpush1.msra.mxu0 %v1061
        %1125 = vmatprep.subr.mxu0 0.0
        %1126 = vmatpush1.msra.mxu0 %v1060
        %1127 = vmatprep.subr.mxu0 0.0
        %1128 = vmatpush1.msra.mxu0 %v1059
        %1129 = vmatprep.subr.mxu0 0.0
        %1130 = vmatpush1.msra.mxu0 %v1058
        %1131 = vmatprep.subr.mxu0 0.0
        %1132 = vmatpush1.msra.mxu0 %v1057
        %1133 = vmatprep.subr.mxu0 0.0
        %1134 = vmatpush1.msra.mxu0 %v1056
        %1135 = vmatprep.subr.mxu0 0.0
        %1136 = vmatpush1.msra.mxu0 %v1055
        %1137 = vmatprep.subr.mxu0 0.0
        %1138 = vmatpush1.msra.mxu0 %v1054
        %1139 = vmatprep.subr.mxu0 0.0
        %1140 = vmatpush1.msra.mxu0 %v1053
        %1141 = vmatprep.subr.mxu0 0.0
        %1142 = vmatpush1.msra.mxu0 %v1052
        %1143 = vmatprep.subr.mxu0 0.0
        %1144 = vmatpush1.msra.mxu0 %v1051
        %1145 = vmatprep.subr.mxu0 0.0
        %1146 = vmatpush1.msra.mxu0 %v1050
        %1147 = vmatprep.subr.mxu0 0.0
        %1148 = vmatpush1.msra.mxu0 %v1049
        %1149 = vmatprep.subr.mxu0 0.0
        %1150 = vmatpush1.msra.mxu0 %v1048
        %1151 = vmatprep.subr.mxu0 0.0
        %1152 = vmatpush1.msra.mxu0 %v1047
        %1153 = vmatprep.subr.mxu0 0.0
        %1154 = vmatpush2.msra.mxu0 %v1078
        %1155 = vmatprep.subr.mxu0 0.0
        %1156 = vmatpush2.msra.mxu0 %v1077
        %1157 = vmatprep.subr.mxu0 0.0
        %1158 = vmatpush2.msra.mxu0 %v1076
        %1159 = vmatprep.subr.mxu0 0.0
        %1160 = vmatpush2.msra.mxu0 %v1075
        %1161 = vmatprep.subr.mxu0 0.0
        %1162 = vmatpush2.msra.mxu0 %v1074
        %1163 = vmatprep.subr.mxu0 0.0
        %1164 = vmatpush2.msra.mxu0 %v1073
        %1165 = vmatprep.subr.mxu0 0.0
        %1166 = vmatpush2.msra.mxu0 %v1072
        %1167 = vmatprep.subr.mxu0 0.0
        %1168 = vmatpush2.msra.mxu0 %v1071
        %1169 = vmatprep.subr.mxu0 0.0
        %1170 = vmatpush2.msra.mxu0 %v1070
        %1171 = vmatprep.subr.mxu0 0.0
        %1172 = vmatpush2.msra.mxu0 %v1069
        %1173 = vmatprep.subr.mxu0 0.0
        %1174 = vmatpush2.msra.mxu0 %v1068
        %1175 = vmatprep.subr.mxu0 0.0
        %1176 = vmatpush2.msra.mxu0 %v1067
        %1177 = vmatprep.subr.mxu0 0.0
        %1178 = vmatpush2.msra.mxu0 %v1066
        %1179 = vmatprep.subr.mxu0 0.0
        %1180 = vmatpush2.msra.mxu0 %v1065
        %1181 = vmatprep.subr.mxu0 0.0
        %1182 = vmatpush2.msra.mxu0 %v1064
        %1183 = vmatprep.subr.mxu0 0.0
        %1184 = vmatpush2.msra.mxu0 %v1063
        %1185 = vmatprep.mubr.f32.mxu0 %v998
        %1186 = vmatmul.mubr.f32.gmra.mxu0 %v996
        %v1187 = vpop.f32.mrf.mxu0
        %v1188 = vadd.f32 %v1114, %v1187
        %v1189 = vpop.f32.mrf.mxu0
        %1190 = vmatprep.mubr.f32.mxu0 %v1002
        %1191 = vmatmul.mubr.f32.gmra.mxu0 %v1000
        %v1192 = vpop.f32.mrf.mxu0
        %v1193 = vadd.f32 %v1119, %v1192
        %v1194 = vpop.f32.mrf.mxu0
        %1195 = vdwg.mxu0
        %1196 = vmatprep.subr.mxu0 0.0
        %1197 = vmatpush1.msra.mxu0 %v1094
        %1198 = vmatprep.subr.mxu0 0.0
        %1199 = vmatpush1.msra.mxu0 %v1093
        %1200 = vmatprep.subr.mxu0 0.0
        %1201 = vmatpush1.msra.mxu0 %v1092
        %1202 = vmatprep.subr.mxu0 0.0
        %1203 = vmatpush1.msra.mxu0 %v1091
        %1204 = vmatprep.subr.mxu0 0.0
        %1205 = vmatpush1.msra.mxu0 %v1090
        %1206 = vmatprep.subr.mxu0 0.0
        %1207 = vmatpush1.msra.mxu0 %v1089
        %1208 = vmatprep.subr.mxu0 0.0
        %1209 = vmatpush1.msra.mxu0 %v1088
        %1210 = vmatprep.subr.mxu0 0.0
        %1211 = vmatpush1.msra.mxu0 %v1087
        %1212 = vmatprep.subr.mxu0 0.0
        %1213 = vmatpush1.msra.mxu0 %v1086
        %1214 = vmatprep.subr.mxu0 0.0
        %1215 = vmatpush1.msra.mxu0 %v1085
        %1216 = vmatprep.subr.mxu0 0.0
        %1217 = vmatpush1.msra.mxu0 %v1084
        %1218 = vmatprep.subr.mxu0 0.0
        %1219 = vmatpush1.msra.mxu0 %v1083
        %1220 = vmatprep.subr.mxu0 0.0
        %1221 = vmatpush1.msra.mxu0 %v1082
        %1222 = vmatprep.subr.mxu0 0.0
        %1223 = vmatpush1.msra.mxu0 %v1081
        %1224 = vmatprep.subr.mxu0 0.0
        %1225 = vmatpush1.msra.mxu0 %v1080
        %1226 = vmatprep.subr.mxu0 0.0
        %1227 = vmatpush1.msra.mxu0 %v1079
        %1228 = vmatprep.subr.mxu0 0.0
        %1229 = vmatpush2.msra.mxu0 %v1110
        %1230 = vmatprep.subr.mxu0 0.0
        %1231 = vmatpush2.msra.mxu0 %v1109
        %1232 = vmatprep.subr.mxu0 0.0
        %1233 = vmatpush2.msra.mxu0 %v1108
        %1234 = vmatprep.subr.mxu0 0.0
        %1235 = vmatpush2.msra.mxu0 %v1107
        %1236 = vmatprep.subr.mxu0 0.0
        %1237 = vmatpush2.msra.mxu0 %v1106
        %1238 = vmatprep.subr.mxu0 0.0
        %1239 = vmatpush2.msra.mxu0 %v1105
        %1240 = vmatprep.subr.mxu0 0.0
        %1241 = vmatpush2.msra.mxu0 %v1104
        %1242 = vmatprep.subr.mxu0 0.0
        %1243 = vmatpush2.msra.mxu0 %v1103
        %1244 = vmatprep.subr.mxu0 0.0
        %1245 = vmatpush2.msra.mxu0 %v1102
        %1246 = vmatprep.subr.mxu0 0.0
        %1247 = vmatpush2.msra.mxu0 %v1101
        %1248 = vmatprep.subr.mxu0 0.0
        %1249 = vmatpush2.msra.mxu0 %v1100
        %1250 = vmatprep.subr.mxu0 0.0
        %1251 = vmatpush2.msra.mxu0 %v1099
        %1252 = vmatprep.subr.mxu0 0.0
        %1253 = vmatpush2.msra.mxu0 %v1098
        %1254 = vmatprep.subr.mxu0 0.0
        %1255 = vmatpush2.msra.mxu0 %v1097
        %1256 = vmatprep.subr.mxu0 0.0
        %1257 = vmatpush2.msra.mxu0 %v1096
        %1258 = vmatprep.subr.mxu0 0.0
        %1259 = vmatpush2.msra.mxu0 %v1095
        %1260 = vmatprep.mubr.f32.mxu0 %v1041
        %1261 = vmatmul.mubr.f32.gmra.mxu0 %v1039
        %v1262 = vpop.f32.mrf.mxu0
        %v1263 = vadd.f32 %v1188, %v1262
        %v1264 = vpop.f32.mrf.mxu0
        %1265 = vmatprep.mubr.f32.mxu0 %v1045
        %1266 = vmatmul.mubr.f32.gmra.mxu0 %v1043
        %v1267 = vpop.f32.mrf.mxu0
        %v1268 = vadd.f32 %v1193, %v1267
        %v1269 = vpop.f32.mrf.mxu0
        %1270 = vdwg.mxu0
        %v1271 = vmul.f32 %v1263, 0.2
        %v1272 = vmul.f32 %v1268, 0.2
        %v1273 = vmax.f32 %v1263, %v1271
        %v1274 = vmax.f32 %v1268, %v1272
        %1275 = vst [vmem:[%s352] sm:$0xff] %v1273
        %1276 = vst [vmem:[%s352 + $0x8] sm:$0xff] %v1274
        %v1277 = vld [vmem:[#allocation5 + $0xc] sm:$0xf]
        %v1278 = vld [vmem:[#allocation5 + $0x10] sm:$0xf]
        %v1279 = vld [vmem:[#allocation5 + $0x14] sm:$0xf]
        %v1280 = vld [vmem:[#allocation5 + $0x18] sm:$0xf]
        %v1281 = vld [vmem:[#allocation7 + $0x18] sm:$0xff]
        %v1282 = vld [vmem:[#allocation7 + $0x20] sm:$0xff]
        %v1283 = vld [vmem:[#allocation7 + $0x28] sm:$0xff]
        %v1284 = vld [vmem:[#allocation7 + $0x30] sm:$0xff]
        %1287 = vrot.lane.b32.xlu0 %v1273, 4
        %v1288 = vpop.permute.xlu0 %1287
        %1289 = vrot.lane.b32.xlu0 %v1274, 4
        %v1290 = vpop.permute.xlu0 %1289
        %vm1293 = vcmask 31744
        %v1294 = vsel %vm1293, 0.0, %v1288
        %v1295 = vsel %vm1293, 0.0, %v1290
        %v1296 = vsel %vm1293, %v1288, 0.0
        %v1297 = vsel %vm1293, %v1290, 0.0
        %1302 = vrot.lane.b32.xlu0 %v1294, 126
        %v1303 = vpop.permute.xlu0 %1302
        %1304 = vrot.lane.b32.xlu0 %v1296, 126
        %v1305 = vpop.permute.xlu0 %1304
        %1306 = vrot.lane.b32.xlu0 %v1295, 126
        %v1307 = vpop.permute.xlu0 %1306
        %1308 = vrot.lane.b32.xlu0 %v1297, 126
        %v1309 = vpop.permute.xlu0 %1308
        %v1310 = vsel %vm447, %v1303, %v1305
        %v1311 = vsel %vm447, %v1307, %v1309
        %1314 = vrot.lane.b32.xlu0 %v1294, 124
        %v1315 = vpop.permute.xlu0 %1314
        %1316 = vrot.lane.b32.xlu0 %v1296, 124
        %v1317 = vpop.permute.xlu0 %1316
        %1318 = vrot.lane.b32.xlu0 %v1295, 124
        %v1319 = vpop.permute.xlu0 %1318
        %1320 = vrot.lane.b32.xlu0 %v1297, 124
        %v1321 = vpop.permute.xlu0 %1320
        %v1322 = vsel %vm495, %v1315, %v1317
        %v1323 = vsel %vm495, %v1319, %v1321
        %1326 = vrot.lane.b32.xlu0 %v1294, 122
        %v1327 = vpop.permute.xlu0 %1326
        %1328 = vrot.lane.b32.xlu0 %v1296, 122
        %v1329 = vpop.permute.xlu0 %1328
        %1330 = vrot.lane.b32.xlu0 %v1295, 122
        %v1331 = vpop.permute.xlu0 %1330
        %1332 = vrot.lane.b32.xlu0 %v1297, 122
        %v1333 = vpop.permute.xlu0 %1332
        %v1334 = vsel %vm543, %v1327, %v1329
        %v1335 = vsel %vm543, %v1331, %v1333
        %1338 = vrot.lane.b32.xlu0 %v1294, 120
        %v1339 = vpop.permute.xlu0 %1338
        %1340 = vrot.lane.b32.xlu0 %v1296, 120
        %v1341 = vpop.permute.xlu0 %1340
        %1342 = vrot.lane.b32.xlu0 %v1295, 120
        %v1343 = vpop.permute.xlu0 %1342
        %1344 = vrot.lane.b32.xlu0 %v1297, 120
        %v1345 = vpop.permute.xlu0 %1344
        %v1346 = vsel %vm869, %v1339, %v1341
        %v1347 = vsel %vm869, %v1343, %v1345
        %v1350 = vpack.c.bf16 %v1295, %v1294
        %v1351 = vpack.c.bf16 %v1311, %v1310
        %v1352 = vpack.c.bf16 %v1323, %v1322
        %v1353 = vpack.c.bf16 %v1335, %v1334
        %v1354 = vpack.c.bf16 %v1347, %v1346
        %1356 = vset.pattern.permute.xlu0 0
        %1357 = vperm.xlu0 %1356, %v1281
        %v1358 = vpop.permute.xlu0 %1357
        %1361 = vset.pattern.permute.xlu0 0
        %1362 = vperm.xlu0 %1361, %v1282
        %v1363 = vpop.permute.xlu0 %1362
        %1366 = vset.pattern.permute.xlu0 0
        %1367 = vperm.xlu0 %1366, %v1283
        %v1368 = vpop.permute.xlu0 %1367
        %1371 = vset.pattern.permute.xlu0 0
        %1372 = vperm.xlu0 %1371, %v1284
        %v1373 = vpop.permute.xlu0 %1372
        %v1379 = vunpack.c.l.b16 %v1277
        %v1380 = vunpack.c.l.b16 %v1278
        %v1381 = vunpack.c.l.b16 %v1279
        %v1382 = vunpack.c.l.b16 %v1280
        %v1383 = vpack.c.b16 %v1380, %v1379
        %v1384 = vpack.c.b16 %v1382, %v1381
        %vm1385 = vcmask 654336
        %v1387 = vsel %vm1385, %v1383, 0
        %v1390 = vsel %vm1385, %v1384, 0
        %1392 = vmatprep.subr.bf16.mxu0 0
        %1393 = vmatpush1.bf16.msra.mxu0 0
        %1394 = vmatprep.subr.bf16.mxu0 0
        %1395 = vmatpush1.bf16.msra.mxu0 0
        %1396 = vmatprep.subr.bf16.mxu0 0
        %1397 = vmatpush1.bf16.msra.mxu0 0
        %1398 = vmatprep.subr.bf16.mxu0 0
        %1399 = vmatpush1.bf16.msra.mxu0 %v1354
        %1400 = vmatprep.subr.bf16.mxu0 0
        %1401 = vmatpush1.bf16.msra.mxu0 %v1353
        %1402 = vmatprep.subr.bf16.mxu0 0
        %1403 = vmatpush1.bf16.msra.mxu0 %v1352
        %1404 = vmatprep.subr.bf16.mxu0 0
        %1405 = vmatpush1.bf16.msra.mxu0 %v1351
        %1406 = vmatprep.subr.bf16.mxu0 0
        %1407 = vmatpush1.bf16.msra.mxu0 %v1350
        %1408 = vmatprep.subr.bf16.mxu0 0
        %1409 = vmatpush2.bf16.msra.mxu0 0
        %1410 = vmatprep.subr.bf16.mxu0 0
        %1411 = vmatpush2.bf16.msra.mxu0 0
        %1412 = vmatprep.subr.bf16.mxu0 0
        %1413 = vmatpush2.bf16.msra.mxu0 0
        %1414 = vmatprep.subr.bf16.mxu0 0
        %1415 = vmatpush2.bf16.msra.mxu0 0
        %1416 = vmatprep.subr.bf16.mxu0 0
        %1417 = vmatpush2.bf16.msra.mxu0 0
        %1418 = vmatprep.subr.bf16.mxu0 0
        %1419 = vmatpush2.bf16.msra.mxu0 0
        %1420 = vmatprep.subr.bf16.mxu0 0
        %1421 = vmatpush2.bf16.msra.mxu0 0
        %1422 = vmatprep.subr.bf16.mxu0 0
        %1423 = vmatpush2.bf16.msra.mxu0 0
        %1424 = vmatprep.mubr.bf16.mxu0 0
        %1425 = vmatmul.mubr.bf16.gmra.mxu0 %v1387
        %v1426 = vpop.f32.mrf.mxu0
        %v1427 = vadd.f32 %v1358, %v1426
        %v1428 = vpop.f32.mrf.mxu0
        %v1429 = vpop.f32.mrf.mxu0
        %v1430 = vadd.f32 %v1363, %v1429
        %v1431 = vpop.f32.mrf.mxu0
        %1432 = vmatprep.mubr.bf16.mxu0 0
        %1433 = vmatmul.mubr.bf16.gmra.mxu0 %v1390
        %v1434 = vpop.f32.mrf.mxu0
        %v1435 = vadd.f32 %v1368, %v1434
        %v1436 = vpop.f32.mrf.mxu0
        %v1437 = vpop.f32.mrf.mxu0
        %v1438 = vadd.f32 %v1373, %v1437
        %v1439 = vpop.f32.mrf.mxu0
        %1440 = vdwg.mxu0
        %v1441 = vmul.f32 %v1427, 0.2
        %v1442 = vmul.f32 %v1430, 0.2
        %v1443 = vmul.f32 %v1435, 0.2
        %v1444 = vmul.f32 %v1438, 0.2
        %v1445 = vmax.f32 %v1427, %v1441
        %v1446 = vmax.f32 %v1430, %v1442
        %v1447 = vmax.f32 %v1435, %v1443
        %v1448 = vmax.f32 %v1438, %v1444
        %1449 = vst [vmem:[%s359] sm:$0xff] %v1445
        %1450 = vst [vmem:[%s359 + $0x8] sm:$0xff] %v1446
        %1451 = vst [vmem:[%s359 + $0x10] sm:$0xff] %v1447
        %1452 = vst [vmem:[%s359 + $0x18] sm:$0xff] %v1448
        %v1453 = vld [vmem:[#allocation5 + $0x1c] sm:$0x1]
        %v1454 = vld [vmem:[#allocation7 + $0x38] sm:$0x1]
        %1459 = vrot.lane.b32.xlu0 %v1445, 127
        %v1460 = vpop.permute.xlu0 %1459
        %1461 = vrot.lane.b32.xlu0 %v1446, 127
        %v1462 = vpop.permute.xlu0 %1461
        %1463 = vrot.lane.b32.xlu0 %v1447, 127
        %v1464 = vpop.permute.xlu0 %1463
        %1465 = vrot.lane.b32.xlu0 %v1448, 127
        %v1466 = vpop.permute.xlu0 %1465
        %1471 = vrot.lane.b32.xlu0 %v1445, 126
        %v1472 = vpop.permute.xlu0 %1471
        %1473 = vrot.lane.b32.xlu0 %v1446, 126
        %v1474 = vpop.permute.xlu0 %1473
        %1475 = vrot.lane.b32.xlu0 %v1447, 126
        %v1476 = vpop.permute.xlu0 %1475
        %1477 = vrot.lane.b32.xlu0 %v1448, 126
        %v1478 = vpop.permute.xlu0 %1477
        %v1483 = vpack.c.bf16 %v1446, %v1445
        %v1484 = vpack.c.bf16 %v1448, %v1447
        %v1485 = vpack.c.bf16 %v1462, %v1460
        %v1486 = vpack.c.bf16 %v1466, %v1464
        %v1487 = vpack.c.bf16 %v1474, %v1472
        %v1488 = vpack.c.bf16 %v1478, %v1476
        %1490 = vset.pattern.permute.xlu0 0
        %1491 = vperm.xlu0 %1490, %v1454
        %v1492 = vpop.permute.xlu0 %1491
        %vm1494 = vcmask 785408
        %v1496 = vsel %vm1494, %v1453, 0
        %1498 = vmatprep.subr.bf16.mxu0 0
        %1499 = vmatpush1.bf16.msra.mxu0 0
        %1500 = vmatprep.subr.bf16.mxu0 0
        %1501 = vmatpush1.bf16.msra.mxu0 0
        %1502 = vmatprep.subr.bf16.mxu0 0
        %1503 = vmatpush1.bf16.msra.mxu0 %v1488
        %1504 = vmatprep.subr.bf16.mxu0 0
        %1505 = vmatpush1.bf16.msra.mxu0 %v1487
        %1506 = vmatprep.subr.bf16.mxu0 0
        %1507 = vmatpush1.bf16.msra.mxu0 %v1486
        %1508 = vmatprep.subr.bf16.mxu0 0
        %1509 = vmatpush1.bf16.msra.mxu0 %v1485
        %1510 = vmatprep.subr.bf16.mxu0 0
        %1511 = vmatpush1.bf16.msra.mxu0 %v1484
        %1512 = vmatprep.subr.bf16.mxu0 0
        %1513 = vmatpush1.bf16.msra.mxu0 %v1483
        %1514 = vmatprep.subr.bf16.mxu0 0
        %1515 = vmatpush2.bf16.msra.mxu0 0
        %1516 = vmatprep.subr.bf16.mxu0 0
        %1517 = vmatpush2.bf16.msra.mxu0 0
        %1518 = vmatprep.subr.bf16.mxu0 0
        %1519 = vmatpush2.bf16.msra.mxu0 0
        %1520 = vmatprep.subr.bf16.mxu0 0
        %1521 = vmatpush2.bf16.msra.mxu0 0
        %1522 = vmatprep.subr.bf16.mxu0 0
        %1523 = vmatpush2.bf16.msra.mxu0 0
        %1524 = vmatprep.subr.bf16.mxu0 0
        %1525 = vmatpush2.bf16.msra.mxu0 0
        %1526 = vmatprep.subr.bf16.mxu0 0
        %1527 = vmatpush2.bf16.msra.mxu0 0
        %1528 = vmatprep.subr.bf16.mxu0 0
        %1529 = vmatpush2.bf16.msra.mxu0 0
        %1530 = vmatprep.mubr.bf16.mxu0 0
        %1531 = vmatmul.mubr.bf16.gmra.mxu0 %v1496
        %v1532 = vpop.f32.mrf.mxu0
        %v1533 = vadd.f32 %v1492, %v1532
        %v1534 = vpop.f32.mrf.mxu0
        %v1535 = vpop.f32.mrf.mxu0
        %v1536 = vpop.f32.mrf.mxu0
        %1537 = vdwg.mxu0
        %vm1538 = vcmask 1024000
        %1539 = vst.msk [vmem:[%s365] sm:$0x1] %vm1538, %v1533
        %s1540 = sand.u32 %s130, 1
        %s1541 = scalar_lea.sflag [#allocation4], %s1540
        %s1542 = sand.u32 %s130, 1
        %s1543 = smul.addr %s1542, 32
        %s1544 = scalar_lea.vmem [#allocation10], %s1543
        %s1545 = sand.u32 %s33, 1
        %s1546 = scalar_lea.sflag [#allocation12], %s1545
        %s1547 = sand.u32 %s156, 1
        %s1548 = smul.addr %s1547, 16
        %s1549 = scalar_lea.vmem [#allocation11], %s1548
        %s1550 = sand.u32 %s33, 1
        %s1551 = scalar_lea.sflag [#allocation12], %s1550
        %s1552 = sand.u32 %s182, 1
        %s1553 = smul.addr %s1552, 32
        %s1554 = scalar_lea.vmem [#allocation13], %s1553
        %s1555 = sand.u32 %s208, 1
        %s1556 = scalar_lea.sflag [#allocation15], %s1555
        %s1557 = sand.u32 %s208, 1
        %s1558 = scalar_lea.vmem [#allocation14], %s1557
        // Predicated region
        $region53: #{_lambda_.1} parent=35 // pred_check
          %p1559 = pneg %p140
        $region54: #{_lambda_.1} parent=35 // pred_check_branch
          %1561 = sbr.rel (%p1559) target = $region56
        $region55: #{_lambda_.1} parent=35 // pred_region
          %s1563 = ssub.s32 512, 512
          %1564 = vsyncadd %s1541, %s1563
          %s1565 = smul.addr %s33, 4
          %s1566 = smul.addr %s1565, 128
          %s1567 = scalar_lea.hbm %s4, %s1566
          %s1569 = sshll.u32 %s1544, 4
          %s1570 = int_to_ptr.vmem [resolvable:$true] %s1569
          %1572 = dma.vmem_to_hbm [thread:$0]  %s1570, 512, %s1567, %s1541
        $region56: #{_lambda_.1} parent=35 // pred_fallthru
          _
        // Predicated region
        $region57: #{_lambda_.1} parent=35 // pred_check
          %p1573 = pneg %p166
        $region58: #{_lambda_.1} parent=35 // pred_check_branch
          %1575 = sbr.rel (%p1573) target = $region60
        $region59: #{_lambda_.1} parent=35 // pred_region
          %s1577 = ssub.s32 256, 256
          %1578 = vsyncadd %s1546, %s1577
          %s1579 = smul.addr %s33, 2
          %s1580 = smul.addr %s1579, 128
          %s1581 = scalar_lea.hbm %s5, %s1580
          %s1582 = sshll.u32 %s1549, 4
          %s1583 = int_to_ptr.vmem [resolvable:$true] %s1582
          %1588 = dma.vmem_to_hbm [thread:$0]  %s1583, 256, %s1581, %s1546, 128, 128, 8
        $region60: #{_lambda_.1} parent=35 // pred_fallthru
          _
        // Predicated region
        $region61: #{_lambda_.1} parent=35 // pred_check
          %p1589 = pneg %p192
        $region62: #{_lambda_.1} parent=35 // pred_check_branch
          %1591 = sbr.rel (%p1589) target = $region64
        $region63: #{_lambda_.1} parent=35 // pred_region
          %s1593 = ssub.s32 512, 512
          %1594 = vsyncadd %s1551, %s1593
          %s1595 = smul.addr %s33, 4
          %s1596 = smul.addr %s1595, 128
          %s1597 = scalar_lea.hbm %s6, %s1596
          %s1598 = sshll.u32 %s1554, 4
          %s1599 = int_to_ptr.vmem [resolvable:$true] %s1598
          %1604 = dma.vmem_to_hbm [thread:$0]  %s1599, 512, %s1597, %s1551, 128, 128, 8
        $region64: #{_lambda_.1} parent=35 // pred_fallthru
          _
        // Predicated region
        $region65: #{_lambda_.1} parent=35 // pred_check
          %p1605 = pneg %p218
        $region66: #{_lambda_.1} parent=35 // pred_check_branch
          %1607 = sbr.rel (%p1605) target = $region68
        $region67: #{_lambda_.1} parent=35 // pred_region
          %s1609 = ssub.s32 16, 16
          %1610 = vsyncadd %s1556, %s1609
          %s1611 = smul.addr %s33, 16
          %s1612 = scalar_lea.hbm %s7, %s1611
          %s1614 = sshll.u32 %s1558, 4
          %s1615 = int_to_ptr.vmem [resolvable:$true] %s1614
          %1617 = dma.vmem_to_hbm [thread:$0]  %s1615, 16, %s1612, %s1556
        $region68: #{_lambda_.1} parent=35 // pred_fallthru
          _
      $region36: #{_lambda_.1} parent=5 // pred_fallthru
        _
      %p1618 = scmp.le.s32.totalorder 2, %s28
      // Predicated region
      $region69: #{_lambda_.1} parent=5 // pred_check
        %p1619 = pneg %p1618
      $region70: #{_lambda_.1} parent=5 // pred_check_branch
        %1621 = sbr.rel (%p1619) target = $region72
      $region71: #{_lambda_.1} parent=5 // pred_region
        %s1622 = ssub.s32 %s28, 2
        // Predicated region
        $region73: #{_lambda_.1} parent=71 // pred_check
          %p1623 = pneg %p146
        $region74: #{_lambda_.1} parent=71 // pred_check_branch
          %1625 = sbr.rel (%p1623) target = $region76
        $region75: #{_lambda_.1} parent=71 // pred_region
          %s1626 = sand.u32 %s131, 1
          %s1627 = scalar_lea.sflag [#allocation4], %s1626
          %s1628 = sand.u32 %s131, 1
          %s1629 = smul.addr %s1628, 32
          %s1630 = scalar_lea.vmem [#allocation10], %s1629
          %1631 = dma.done %s1627, 512
        $region76: #{_lambda_.1} parent=71 // pred_fallthru
          _
        // Predicated region
        $region77: #{_lambda_.1} parent=71 // pred_check
          %p1632 = pneg %p172
        $region78: #{_lambda_.1} parent=71 // pred_check_branch
          %1634 = sbr.rel (%p1632) target = $region80
        $region79: #{_lambda_.1} parent=71 // pred_region
          %s1635 = sand.u32 %s34, 1
          %s1636 = scalar_lea.sflag [#allocation12], %s1635
          %s1637 = sand.u32 %s157, 1
          %s1638 = smul.addr %s1637, 16
          %s1639 = scalar_lea.vmem [#allocation11], %s1638
          %1640 = dma.done %s1636, 256
        $region80: #{_lambda_.1} parent=71 // pred_fallthru
          _
        // Predicated region
        $region81: #{_lambda_.1} parent=71 // pred_check
          %p1641 = pneg %p198
        $region82: #{_lambda_.1} parent=71 // pred_check_branch
          %1643 = sbr.rel (%p1641) target = $region84
        $region83: #{_lambda_.1} parent=71 // pred_region
          %s1644 = sand.u32 %s34, 1
          %s1645 = scalar_lea.sflag [#allocation12], %s1644
          %s1646 = sand.u32 %s183, 1
          %s1647 = smul.addr %s1646, 32
          %s1648 = scalar_lea.vmem [#allocation13], %s1647
          %1649 = dma.done %s1645, 512
        $region84: #{_lambda_.1} parent=71 // pred_fallthru
          _
        // Predicated region
        $region85: #{_lambda_.1} parent=71 // pred_check
          %p1650 = pneg %p224
        $region86: #{_lambda_.1} parent=71 // pred_check_branch
          %1652 = sbr.rel (%p1650) target = $region88
        $region87: #{_lambda_.1} parent=71 // pred_region
          %s1653 = sand.u32 %s209, 1
          %s1654 = scalar_lea.sflag [#allocation15], %s1653
          %s1655 = sand.u32 %s209, 1
          %s1656 = scalar_lea.vmem [#allocation14], %s1655
          %1657 = dma.done %s1654, 16
        $region88: #{_lambda_.1} parent=71 // pred_fallthru
          _
      $region72: #{_lambda_.1} parent=5 // pred_fallthru
        _
    $region6: #{_lambda_.1} parent=1 // loop_footer
      %s32 = sadd.s32 1, %s28
    $region7: #{_lambda_.1} parent=1 // loop_footer_branch
      %27 = sbr.rel target = $region3
    $region8: #{_lambda_.1} parent=1 // loop_exit
      _
    %1658 = vsyncpa [#allocation3], 1
    %s1659 = scalar_lea.sflag [#allocation3], 1
    %1660 = vsyncpa %s1659, 1
    %1661 = vsyncpa [#allocation6], 1
    %1662 = vsyncpa [#allocation9], 1
    %1663 = vsyncpa [#allocation4], 1
    %s1664 = scalar_lea.sflag [#allocation4], 1
    %1665 = vsyncpa %s1664, 1
    %1666 = vsyncpa [#allocation12], 1
    %s1667 = scalar_lea.sflag [#allocation12], 1
    %1668 = vsyncpa %s1667, 1
    %1669 = vsyncpa [#allocation15], 1
    %s1670 = scalar_lea.sflag [#allocation15], 1
    %1671 = vsyncpa %s1670, 1

</llo_original>
